<compile_context>
chip_gen: v6e
topology: v6e:2x2x1
jax: 0.10.0
libtpu: 0.0.40
codegen_flags: <defaults>
</compile_context>

<pallas_src>
import functools
from math import sqrt

import jax
import jax.numpy as jnp
from jax.experimental import pallas as pl
from jax.experimental.pallas import tpu as pltpu


# ----------------------------- Pallas kernels --------------------------------

def transformer_stack_kernel(x_ref, wqkv_ref, w1_ref, w2_ref, o_ref, x_sc,
                             *, n_heads, d_proj):
    """All transformer blocks for one batch element; grid = (batch, layer).

    x_ref    : (1, S, D)        f32   input activations (only consumed at layer 0)
    wqkv_ref : (1, D, 3*H*dp)   bf16  fused per-layer [Wq | Wk | Wv]
    w1_ref   : (1, D, hidden)   bf16
    w2_ref   : (1, hidden, D)   bf16
    o_ref    : (1, S, D)        f32   written at the last layer
    x_sc     : (S, D)           f32   VMEM-resident activation carried across layers
    """
    layer = pl.program_id(1)

    @pl.when(layer == 0)
    def _():
        x_sc[...] = x_ref[0]

    x = x_sc[...]                                  # (S, D) f32
    S, D = x.shape
    hd = n_heads * d_proj
    scale = 1.0 / sqrt(d_proj)

    # Fused QKV projection: one wide bf16 matmul instead of 3*H narrow (N=dp) ones.
    qkv = jnp.dot(x.astype(jnp.bfloat16), wqkv_ref[0],
                  preferred_element_type=jnp.float32)          # (S, 3*H*dp) f32
    q = qkv[:, :hd] * scale                        # scale on q: S*dp muls, not S*S
    k = qkv[:, hd:2 * hd]
    v = qkv[:, 2 * hd:]

    # Additive causal bias (strict upper triangle) — finite, so no inf-inf NaN risk.
    row = jax.lax.broadcasted_iota(jnp.int32, (S, S), 0)
    col = jax.lax.broadcasted_iota(jnp.int32, (S, S), 1)
    causal_bias = jnp.where(col > row, jnp.float32(-1e30), jnp.float32(0.0))

    # TODO(synk): for large S, tile the query/key axes flash-style (running max/denom)
    # and skip fully masked upper-triangular tiles; unnecessary at S=8.
    head_outs = []
    for h in range(n_heads):                       # static -> unrolled
        sl = slice(h * d_proj, (h + 1) * d_proj)
        s = jnp.dot(q[:, sl], k[:, sl].T,
                    preferred_element_type=jnp.float32) + causal_bias   # (S, S) f32
        m = jnp.max(s, axis=-1, keepdims=True)
        e = jnp.exp(s - m)
        denom = jnp.sum(e, axis=-1, keepdims=True)
        p = e * pl.reciprocal(denom, approx=True)  # EUP slot, frees the VPU
        head_outs.append(jnp.dot(p, v[:, sl], preferred_element_type=jnp.float32))
    att = jnp.concatenate(head_outs, axis=-1)      # (S, H*dp) = (S, D)

    a = x + att                                    # first residual (f32)

    # TODO(synk): for large hidden, add a reduction grid axis over the hidden dim with an
    # f32 VMEM accumulator instead of holding full (D,hidden)+(hidden,D) weights in VMEM.
    h1 = jnp.maximum(
        jnp.dot(a.astype(jnp.bfloat16), w1_ref[0], preferred_element_type=jnp.float32),
        0.0)
    h2 = jnp.maximum(
        jnp.dot(h1.astype(jnp.bfloat16), w2_ref[0], preferred_element_type=jnp.float32),
        0.0)
    y = x + h2                                     # second residual (from x, per spec)
    x_sc[...] = y

    @pl.when(layer == pl.num_programs(1) - 1)
    def _():
        o_ref[0] = y


def vocab_kernel(x_ref, w_ref, o_ref):
    o_ref[...] = jnp.dot(x_ref[...].astype(jnp.bfloat16), w_ref[...],
                         preferred_element_type=jnp.float32)


# ----------------------------- wrappers ---------------------------------------

def transformer_stack(x, wqkv, w1, w2, *, n_heads):
    B, S, D = x.shape
    L, _, three_hd = wqkv.shape
    Hf = w1.shape[2]
    d_proj = D // n_heads
    kernel = functools.partial(transformer_stack_kernel,
                               n_heads=n_heads, d_proj=d_proj)
    return pl.pallas_call(
        kernel,
        out_shape=jax.ShapeDtypeStruct((B, S, D), jnp.float32),
        grid=(B, L),                               # layer axis last / innermost
        in_specs=[
            pl.BlockSpec((1, S, D), lambda b, l: (b, 0, 0)),        # re-used across l
            pl.BlockSpec((1, D, three_hd), lambda b, l: (l, 0, 0)),
            pl.BlockSpec((1, D, Hf), lambda b, l: (l, 0, 0)),
            pl.BlockSpec((1, Hf, D), lambda b, l: (l, 0, 0)),
        ],
        out_specs=pl.BlockSpec((1, S, D), lambda b, l: (b, 0, 0)),
        scratch_shapes=[pltpu.VMEM((S, D), jnp.float32)],
        compiler_params=pltpu.CompilerParams(
            dimension_semantics=("parallel", "arbitrary")),
    )(x, wqkv, w1, w2)


def vocab_project(x, w_vocab, *, tile_m=256, tile_v=512):
    B, S, D = x.shape
    V = w_vocab.shape[1]
    M = B * S
    xf = x.reshape(M, D)
    # (8,128) rule: tiles must be multiples of (8,128) or the full dim.
    tm = tile_m if (M % tile_m == 0) else M
    tv = tile_v if (V % tile_v == 0) else V
    out = pl.pallas_call(
        vocab_kernel,
        out_shape=jax.ShapeDtypeStruct((M, V), jnp.float32),
        grid=(pl.cdiv(M, tm), pl.cdiv(V, tv)),
        in_specs=[
            pl.BlockSpec((tm, D), lambda i, j: (i, 0)),
            pl.BlockSpec((D, tv), lambda i, j: (0, j)),
        ],
        out_specs=pl.BlockSpec((tm, tv), lambda i, j: (i, j)),
        compiler_params=pltpu.CompilerParams(
            dimension_semantics=("parallel", "parallel")),
    )(xf, w_vocab)
    return out.reshape(B, S, V)


def transformer_forward(tokens, kparams):
    # TODO(synk): embedding lookups are data-dependent gathers; kept in plain JAX glue.
    emb = kparams["embedding"][tokens]                                    # (B, S, D)
    pos_emb = kparams["pos_embedding"][jnp.arange(tokens.shape[1])][None] # (1, S, D)
    x = (emb + pos_emb).astype(jnp.float32)
    x = transformer_stack(x, kparams["wqkv"], kparams["w1"], kparams["w2"],
                          n_heads=kparams["n_heads"])
    return vocab_project(x, kparams["w_vocab"])


def prepare_kernel_params(params, n_heads):
    """Stack per-layer weights along a leading layer axis and cast to bf16."""
    return {
        "embedding": params["embedding"],
        "pos_embedding": params["pos_embedding"],
        "wqkv": jnp.stack([b["wqkv"] for b in params["blocks"]]).astype(jnp.bfloat16),
        "w1": jnp.stack([b["w1"] for b in params["blocks"]]).astype(jnp.bfloat16),
        "w2": jnp.stack([b["w2"] for b in params["blocks"]]).astype(jnp.bfloat16),
        "w_vocab": params["w_vocab"].astype(jnp.bfloat16),
        "n_heads": n_heads,
    }


# ----------------------------- pure-JAX reference (f32, spec-faithful) ---------

def reference_forward(tokens, params, *, n_heads):
    emb = params["embedding"][tokens]
    pos_emb = params["pos_embedding"][jnp.arange(tokens.shape[1])][None]
    x = emb + pos_emb
    for blk in params["blocks"]:
        D = x.shape[-1]
        dp = D // n_heads
        hd = n_heads * dp
        wq = blk["wqkv"][:, :hd]
        wk = blk["wqkv"][:, hd:2 * hd]
        wv = blk["wqkv"][:, 2 * hd:]
        S = x.shape[1]
        mask = jnp.triu(jnp.ones((S, S), bool), k=1)
        outs = []
        for h in range(n_heads):
            sl = slice(h * dp, (h + 1) * dp)
            q = x @ wq[:, sl]
            k = x @ wk[:, sl]
            v = x @ wv[:, sl]
            s = jnp.einsum("bqd,bkd->bqk", q, k) / sqrt(dp)
            s = jnp.where(mask[None], -jnp.inf, s)
            p = jax.nn.softmax(s, axis=-1)
            outs.append(jnp.einsum("bqk,bkd->bqd", p, v))
        att = jnp.concatenate(outs, axis=-1)
        a = x + att
        h1 = jax.nn.relu(a @ blk["w1"])
        h2 = jax.nn.relu(h1 @ blk["w2"])
        x = x + h2
    return x @ params["w_vocab"]


# ----------------------------- parameter init ----------------------------------

def init_params(key, *, d_model, vocab_size, seq_len, n_heads, hidden, n_layers):
    d_proj = d_model // n_heads
    keys = jax.random.split(key, 3 + n_layers)
    params = {
        "embedding": 0.02 * jax.random.normal(keys[0], (vocab_size, d_model), jnp.float32),
        "pos_embedding": 0.02 * jax.random.normal(keys[1], (seq_len, d_model), jnp.float32),
        "w_vocab": 0.05 * jax.random.normal(keys[2], (d_model, vocab_size), jnp.float32),
        "blocks": [],
    }
    for l in range(n_layers):
        ks = jax.random.split(keys[3 + l], 3)
        params["blocks"].append({
            # fused [Wq | Wk | Wv], each (d_model, n_heads*d_proj), head-major per projection
            "wqkv": 0.05 * jax.random.normal(ks[0], (d_model, 3 * n_heads * d_proj), jnp.float32),
            "w1": 0.05 * jax.random.normal(ks[1], (d_model, hidden), jnp.float32),
            "w2": 0.05 * jax.random.normal(ks[2], (hidden, d_model), jnp.float32),
        })
    return params


# ----------------------------- main ---------------------------------------------

if __name__ == "__main__":
    d_model, vocab_size, seq_len, n_heads, hidden, n_layers = 32, 50, 8, 4, 64, 2
    batch = 2

    key = jax.random.PRNGKey(0)
    k_params, k_tokens = jax.random.split(key)
    params = init_params(k_params, d_model=d_model, vocab_size=vocab_size,
                         seq_len=seq_len, n_heads=n_heads, hidden=hidden,
                         n_layers=n_layers)
    tokens = jax.random.randint(k_tokens, (batch, seq_len), 0, vocab_size, dtype=jnp.int32)

    kparams = prepare_kernel_params(params, n_heads)
    logits = jax.block_until_ready(transformer_forward(tokens, kparams))
    assert logits.shape == (batch, seq_len, vocab_size)

    ref = jax.block_until_ready(reference_forward(tokens, params, n_heads=n_heads))
    # bf16 matmul inputs + approx-reciprocal softmax => mixed-precision tolerance vs f32 ref
    assert jnp.allclose(logits, ref, atol=1e-3, rtol=1e-2), (
        f"Pallas output mismatch vs reference, max abs err = {jnp.max(jnp.abs(logits - ref))}")

    print("KERNEL_OK")
</pallas_src>

<mosaic_0001>
module attributes {stable_mosaic.version = 11 : i64} {
  func.func @transformer_stack_kernel(%arg0: i32, %arg1: i32, %arg2: memref<1x8x32xf32, #tpu.memory_space<vmem>>, %arg3: memref<1x32x96xbf16, #tpu.memory_space<vmem>>, %arg4: memref<1x32x64xbf16, #tpu.memory_space<vmem>>, %arg5: memref<1x64x32xbf16, #tpu.memory_space<vmem>>, %arg6: memref<1x8x32xf32, #tpu.memory_space<vmem>>, %arg7: memref<8x32xf32, #tpu.memory_space<vmem>>) attributes {dimension_semantics = [#tpu.dimension_semantics<parallel>, #tpu.dimension_semantics<arbitrary>], iteration_bounds = array<i64: 2, 2>, scalar_prefetch = 0 : i64, scratch_operands = 1 : i64, tpu.core_type = #tpu.core_type<tc>, window_params = [{transform_indices = @transform_0, window_bounds = array<i64: 1, 8, 32>}, {transform_indices = @transform_1, window_bounds = array<i64: 1, 32, 96>}, {transform_indices = @transform_2, window_bounds = array<i64: 1, 32, 64>}, {transform_indices = @transform_3, window_bounds = array<i64: 1, 64, 32>}, {transform_indices = @transform_4, window_bounds = array<i64: 1, 8, 32>}]} {
    %c0_i32 = arith.constant 0 : i32
    %0 = arith.cmpi eq, %arg1, %c0_i32 : i32
    %1 = arith.extui %0 : i1 to i32
    %c0_i32_0 = arith.constant 0 : i32
    %2 = arith.cmpi ne, %1, %c0_i32_0 : i32
    scf.if %2 {
      %c0_37 = arith.constant 0 : index
      %c0_38 = arith.constant 0 : index
      %c0_39 = arith.constant 0 : index
      %106 = vector.load %arg2[%c0_37, %c0_38, %c0_39] : memref<1x8x32xf32, #tpu.memory_space<vmem>>, vector<1x8x32xf32>
      %107 = vector.shape_cast %106 : vector<1x8x32xf32> to vector<8x32xf32>
      %c0_40 = arith.constant 0 : index
      %c0_41 = arith.constant 0 : index
      %108 = vector.load %arg7[%c0_40, %c0_41] : memref<8x32xf32, #tpu.memory_space<vmem>>, vector<8x32xf32>
      tpu.vector_store %arg7[%c0_40, %c0_41], %107 {strides = array<i32>} : memref<8x32xf32, #tpu.memory_space<vmem>>, vector<8x32xf32>,
    } else {
    }
    %c0 = arith.constant 0 : index
    %c0_1 = arith.constant 0 : index
    %3 = vector.load %arg7[%c0, %c0_1] : memref<8x32xf32, #tpu.memory_space<vmem>>, vector<8x32xf32>
    %4 = arith.truncf %3 : vector<8x32xf32> to vector<8x32xbf16>
    %c0_2 = arith.constant 0 : index
    %c0_3 = arith.constant 0 : index
    %c0_4 = arith.constant 0 : index
    %5 = vector.load %arg3[%c0_2, %c0_3, %c0_4] : memref<1x32x96xbf16, #tpu.memory_space<vmem>>, vector<1x32x96xbf16>
    %6 = vector.shape_cast %5 : vector<1x32x96xbf16> to vector<32x96xbf16>
    %cst = arith.constant dense<0.000000e+00> : vector<8x96xf32>
    %7 = tpu.matmul %4, %6, %cst {dimension_numbers = #tpu.dot_dimension_numbers<[1], [0], [0], [1], [0, 0, 1, 1], [], []>} : vector<8x32xbf16>, vector<32x96xbf16>, vector<8x96xf32> -> vector<8x96xf32>
    %8 = vector.extract_strided_slice %7 {offsets = [0, 0], sizes = [8, 32], strides = [1, 1]} : vector<8x96xf32> to vector<8x32xf32>
    %cst_5 = arith.constant 0.353553385 : f32
    %9 = vector.broadcast %cst_5 : f32 to vector<8x32xf32>
    %10 = arith.mulf %8, %9 : vector<8x32xf32>
    %11 = vector.extract_strided_slice %7 {offsets = [0, 32], sizes = [8, 32], strides = [1, 1]} : vector<8x96xf32> to vector<8x32xf32>
    %12 = vector.extract_strided_slice %7 {offsets = [0, 64], sizes = [8, 32], strides = [1, 1]} : vector<8x96xf32> to vector<8x32xf32>
    %13 = tpu.iota {dimensions = array<i32: 0>} : vector<8x8xi32>
    %14 = tpu.iota {dimensions = array<i32: 1>} : vector<8x8xi32>
    %15 = arith.cmpi sgt, %14, %13 : vector<8x8xi32>
    %cst_6 = arith.constant -1.000000e+30 : f32
    %cst_7 = arith.constant 0.000000e+00 : f32
    %16 = vector.broadcast %cst_6 : f32 to vector<8x8xf32>
    %17 = vector.broadcast %cst_7 : f32 to vector<8x8xf32>
    %18 = arith.select %15, %16, %17 : vector<8x8xi1>, vector<8x8xf32>
    %19 = vector.extract_strided_slice %10 {offsets = [0, 0], sizes = [8, 8], strides = [1, 1]} : vector<8x32xf32> to vector<8x8xf32>
    %20 = vector.extract_strided_slice %11 {offsets = [0, 0], sizes = [8, 8], strides = [1, 1]} : vector<8x32xf32> to vector<8x8xf32>
    %21 = tpu.transpose %20, [1, 0] : vector<8x8xf32> -> vector<8x8xf32>
    %cst_8 = arith.constant dense<0.000000e+00> : vector<8x8xf32>
    %22 = tpu.matmul %19, %21, %cst_8 {dimension_numbers = #tpu.dot_dimension_numbers<[1], [0], [0], [1], [0, 0, 1, 1], [], []>} : vector<8x8xf32>, vector<8x8xf32>, vector<8x8xf32> -> vector<8x8xf32>
    %23 = arith.addf %22, %18 : vector<8x8xf32>
    %cst_9 = arith.constant dense<0xFF800000> : vector<8xf32>
    %24 = vector.multi_reduction <maximumf>, %23, %cst_9 [1] : vector<8x8xf32> to vector<8xf32>
    %25 = vector.shape_cast %24 : vector<8xf32> to vector<8x1xf32>
    %26 = vector.broadcast %25 : vector<8x1xf32> to vector<8x8xf32>
    %27 = arith.subf %23, %26 : vector<8x8xf32>
    %28 = math.exp %27 : vector<8x8xf32>
    %cst_10 = arith.constant dense<0.000000e+00> : vector<8xf32>
    %29 = vector.multi_reduction <add>, %28, %cst_10 [1] : vector<8x8xf32> to vector<8xf32>
    %30 = vector.shape_cast %29 : vector<8xf32> to vector<8x1xf32>
    %31 = tpu.reciprocal %30 {approx = true} : vector<8x1xf32> -> vector<8x1xf32>
    %32 = vector.broadcast %31 : vector<8x1xf32> to vector<8x8xf32>
    %33 = arith.mulf %28, %32 : vector<8x8xf32>
    %34 = vector.extract_strided_slice %12 {offsets = [0, 0], sizes = [8, 8], strides = [1, 1]} : vector<8x32xf32> to vector<8x8xf32>
    %cst_11 = arith.constant dense<0.000000e+00> : vector<8x8xf32>
    %35 = tpu.matmul %33, %34, %cst_11 {dimension_numbers = #tpu.dot_dimension_numbers<[1], [0], [0], [1], [0, 0, 1, 1], [], []>} : vector<8x8xf32>, vector<8x8xf32>, vector<8x8xf32> -> vector<8x8xf32>
    %36 = vector.extract_strided_slice %10 {offsets = [0, 8], sizes = [8, 8], strides = [1, 1]} : vector<8x32xf32> to vector<8x8xf32>
    %37 = vector.extract_strided_slice %11 {offsets = [0, 8], sizes = [8, 8], strides = [1, 1]} : vector<8x32xf32> to vector<8x8xf32>
    %38 = tpu.transpose %37, [1, 0] : vector<8x8xf32> -> vector<8x8xf32>
    %cst_12 = arith.constant dense<0.000000e+00> : vector<8x8xf32>
    %39 = tpu.matmul %36, %38, %cst_12 {dimension_numbers = #tpu.dot_dimension_numbers<[1], [0], [0], [1], [0, 0, 1, 1], [], []>} : vector<8x8xf32>, vector<8x8xf32>, vector<8x8xf32> -> vector<8x8xf32>
    %40 = arith.addf %39, %18 : vector<8x8xf32>
    %cst_13 = arith.constant dense<0xFF800000> : vector<8xf32>
    %41 = vector.multi_reduction <maximumf>, %40, %cst_13 [1] : vector<8x8xf32> to vector<8xf32>
    %42 = vector.shape_cast %41 : vector<8xf32> to vector<8x1xf32>
    %43 = vector.broadcast %42 : vector<8x1xf32> to vector<8x8xf32>
    %44 = arith.subf %40, %43 : vector<8x8xf32>
    %45 = math.exp %44 : vector<8x8xf32>
    %cst_14 = arith.constant dense<0.000000e+00> : vector<8xf32>
    %46 = vector.multi_reduction <add>, %45, %cst_14 [1] : vector<8x8xf32> to vector<8xf32>
    %47 = vector.shape_cast %46 : vector<8xf32> to vector<8x1xf32>
    %48 = tpu.reciprocal %47 {approx = true} : vector<8x1xf32> -> vector<8x1xf32>
    %49 = vector.broadcast %48 : vector<8x1xf32> to vector<8x8xf32>
    %50 = arith.mulf %45, %49 : vector<8x8xf32>
    %51 = vector.extract_strided_slice %12 {offsets = [0, 8], sizes = [8, 8], strides = [1, 1]} : vector<8x32xf32> to vector<8x8xf32>
    %cst_15 = arith.constant dense<0.000000e+00> : vector<8x8xf32>
    %52 = tpu.matmul %50, %51, %cst_15 {dimension_numbers = #tpu.dot_dimension_numbers<[1], [0], [0], [1], [0, 0, 1, 1], [], []>} : vector<8x8xf32>, vector<8x8xf32>, vector<8x8xf32> -> vector<8x8xf32>
    %53 = vector.extract_strided_slice %10 {offsets = [0, 16], sizes = [8, 8], strides = [1, 1]} : vector<8x32xf32> to vector<8x8xf32>
    %54 = vector.extract_strided_slice %11 {offsets = [0, 16], sizes = [8, 8], strides = [1, 1]} : vector<8x32xf32> to vector<8x8xf32>
    %55 = tpu.transpose %54, [1, 0] : vector<8x8xf32> -> vector<8x8xf32>
    %cst_16 = arith.constant dense<0.000000e+00> : vector<8x8xf32>
    %56 = tpu.matmul %53, %55, %cst_16 {dimension_numbers = #tpu.dot_dimension_numbers<[1], [0], [0], [1], [0, 0, 1, 1], [], []>} : vector<8x8xf32>, vector<8x8xf32>, vector<8x8xf32> -> vector<8x8xf32>
    %57 = arith.addf %56, %18 : vector<8x8xf32>
    %cst_17 = arith.constant dense<0xFF800000> : vector<8xf32>
    %58 = vector.multi_reduction <maximumf>, %57, %cst_17 [1] : vector<8x8xf32> to vector<8xf32>
    %59 = vector.shape_cast %58 : vector<8xf32> to vector<8x1xf32>
    %60 = vector.broadcast %59 : vector<8x1xf32> to vector<8x8xf32>
    %61 = arith.subf %57, %60 : vector<8x8xf32>
    %62 = math.exp %61 : vector<8x8xf32>
    %cst_18 = arith.constant dense<0.000000e+00> : vector<8xf32>
    %63 = vector.multi_reduction <add>, %62, %cst_18 [1] : vector<8x8xf32> to vector<8xf32>
    %64 = vector.shape_cast %63 : vector<8xf32> to vector<8x1xf32>
    %65 = tpu.reciprocal %64 {approx = true} : vector<8x1xf32> -> vector<8x1xf32>
    %66 = vector.broadcast %65 : vector<8x1xf32> to vector<8x8xf32>
    %67 = arith.mulf %62, %66 : vector<8x8xf32>
    %68 = vector.extract_strided_slice %12 {offsets = [0, 16], sizes = [8, 8], strides = [1, 1]} : vector<8x32xf32> to vector<8x8xf32>
    %cst_19 = arith.constant dense<0.000000e+00> : vector<8x8xf32>
    %69 = tpu.matmul %67, %68, %cst_19 {dimension_numbers = #tpu.dot_dimension_numbers<[1], [0], [0], [1], [0, 0, 1, 1], [], []>} : vector<8x8xf32>, vector<8x8xf32>, vector<8x8xf32> -> vector<8x8xf32>
    %70 = vector.extract_strided_slice %10 {offsets = [0, 24], sizes = [8, 8], strides = [1, 1]} : vector<8x32xf32> to vector<8x8xf32>
    %71 = vector.extract_strided_slice %11 {offsets = [0, 24], sizes = [8, 8], strides = [1, 1]} : vector<8x32xf32> to vector<8x8xf32>
    %72 = tpu.transpose %71, [1, 0] : vector<8x8xf32> -> vector<8x8xf32>
    %cst_20 = arith.constant dense<0.000000e+00> : vector<8x8xf32>
    %73 = tpu.matmul %70, %72, %cst_20 {dimension_numbers = #tpu.dot_dimension_numbers<[1], [0], [0], [1], [0, 0, 1, 1], [], []>} : vector<8x8xf32>, vector<8x8xf32>, vector<8x8xf32> -> vector<8x8xf32>
    %74 = arith.addf %73, %18 : vector<8x8xf32>
    %cst_21 = arith.constant dense<0xFF800000> : vector<8xf32>
    %75 = vector.multi_reduction <maximumf>, %74, %cst_21 [1] : vector<8x8xf32> to vector<8xf32>
    %76 = vector.shape_cast %75 : vector<8xf32> to vector<8x1xf32>
    %77 = vector.broadcast %76 : vector<8x1xf32> to vector<8x8xf32>
    %78 = arith.subf %74, %77 : vector<8x8xf32>
    %79 = math.exp %78 : vector<8x8xf32>
    %cst_22 = arith.constant dense<0.000000e+00> : vector<8xf32>
    %80 = vector.multi_reduction <add>, %79, %cst_22 [1] : vector<8x8xf32> to vector<8xf32>
    %81 = vector.shape_cast %80 : vector<8xf32> to vector<8x1xf32>
    %82 = tpu.reciprocal %81 {approx = true} : vector<8x1xf32> -> vector<8x1xf32>
    %83 = vector.broadcast %82 : vector<8x1xf32> to vector<8x8xf32>
    %84 = arith.mulf %79, %83 : vector<8x8xf32>
    %85 = vector.extract_strided_slice %12 {offsets = [0, 24], sizes = [8, 8], strides = [1, 1]} : vector<8x32xf32> to vector<8x8xf32>
    %cst_23 = arith.constant dense<0.000000e+00> : vector<8x8xf32>
    %86 = tpu.matmul %84, %85, %cst_23 {dimension_numbers = #tpu.dot_dimension_numbers<[1], [0], [0], [1], [0, 0, 1, 1], [], []>} : vector<8x8xf32>, vector<8x8xf32>, vector<8x8xf32> -> vector<8x8xf32>
    %87 = tpu.concatenate %35, %52, %69, %86 in 1 : vector<8x8xf32>, vector<8x8xf32>, vector<8x8xf32>, vector<8x8xf32> -> vector<8x32xf32>
    %88 = arith.addf %3, %87 : vector<8x32xf32>
    %89 = arith.truncf %88 : vector<8x32xf32> to vector<8x32xbf16>
    %c0_24 = arith.constant 0 : index
    %c0_25 = arith.constant 0 : index
    %c0_26 = arith.constant 0 : index
    %90 = vector.load %arg4[%c0_24, %c0_25, %c0_26] : memref<1x32x64xbf16, #tpu.memory_space<vmem>>, vector<1x32x64xbf16>
    %91 = vector.shape_cast %90 : vector<1x32x64xbf16> to vector<32x64xbf16>
    %cst_27 = arith.constant dense<0.000000e+00> : vector<8x64xf32>
    %92 = tpu.matmul %89, %91, %cst_27 {dimension_numbers = #tpu.dot_dimension_numbers<[1], [0], [0], [1], [0, 0, 1, 1], [], []>} : vector<8x32xbf16>, vector<32x64xbf16>, vector<8x64xf32> -> vector<8x64xf32>
    %cst_28 = arith.constant 0.000000e+00 : f32
    %93 = vector.broadcast %cst_28 : f32 to vector<8x64xf32>
    %94 = arith.maximumf %92, %93 : vector<8x64xf32>
    %95 = arith.truncf %94 : vector<8x64xf32> to vector<8x64xbf16>
    %c0_29 = arith.constant 0 : index
    %c0_30 = arith.constant 0 : index
    %c0_31 = arith.constant 0 : index
    %96 = vector.load %arg5[%c0_29, %c0_30, %c0_31] : memref<1x64x32xbf16, #tpu.memory_space<vmem>>, vector<1x64x32xbf16>
    %97 = vector.shape_cast %96 : vector<1x64x32xbf16> to vector<64x32xbf16>
    %cst_32 = arith.constant dense<0.000000e+00> : vector<8x32xf32>
    %98 = tpu.matmul %95, %97, %cst_32 {dimension_numbers = #tpu.dot_dimension_numbers<[1], [0], [0], [1], [0, 0, 1, 1], [], []>} : vector<8x64xbf16>, vector<64x32xbf16>, vector<8x32xf32> -> vector<8x32xf32>
    %cst_33 = arith.constant 0.000000e+00 : f32
    %99 = vector.broadcast %cst_33 : f32 to vector<8x32xf32>
    %100 = arith.maximumf %98, %99 : vector<8x32xf32>
    %101 = arith.addf %3, %100 : vector<8x32xf32>
    %c0_34 = arith.constant 0 : index
    %c0_35 = arith.constant 0 : index
    %102 = vector.load %arg7[%c0_34, %c0_35] : memref<8x32xf32, #tpu.memory_space<vmem>>, vector<8x32xf32>
    tpu.vector_store %arg7[%c0_34, %c0_35], %101 {strides = array<i32>} : memref<8x32xf32, #tpu.memory_space<vmem>>, vector<8x32xf32>,
    %c1_i32 = arith.constant 1 : i32
    %103 = arith.cmpi eq, %arg1, %c1_i32 : i32
    %104 = arith.extui %103 : i1 to i32
    %c0_i32_36 = arith.constant 0 : i32
    %105 = arith.cmpi ne, %104, %c0_i32_36 : i32
    scf.if %105 {
      %c0_37 = arith.constant 0 : index
      %c0_38 = arith.constant 0 : index
      %c0_39 = arith.constant 0 : index
      %106 = vector.load %arg6[%c0_37, %c0_38, %c0_39] : memref<1x8x32xf32, #tpu.memory_space<vmem>>, vector<1x8x32xf32>
      %107 = vector.shape_cast %106 : vector<1x8x32xf32> to vector<8x32xf32>
      %108 = vector.shape_cast %101 : vector<8x32xf32> to vector<1x8x32xf32>
      tpu.vector_store %arg6[%c0_37, %c0_38, %c0_39], %108 {strides = array<i32>} : memref<1x8x32xf32, #tpu.memory_space<vmem>>, vector<1x8x32xf32>,
    } else {
    }
    return
  }
  func.func @transform_0(%arg0: i32, %arg1: i32) -> (i32, i32, i32) {
    %c0_i32 = arith.constant 0 : i32
    %c0_i32_0 = arith.constant 0 : i32
    %c0_i32_1 = arith.constant 0 : i32
    return %arg0, %c0_i32, %c0_i32_0 : i32, i32, i32
  }
  func.func @transform_1(%arg0: i32, %arg1: i32) -> (i32, i32, i32) {
    %c0_i32 = arith.constant 0 : i32
    %c0_i32_0 = arith.constant 0 : i32
    %c0_i32_1 = arith.constant 0 : i32
    return %arg1, %c0_i32, %c0_i32_0 : i32, i32, i32
  }
  func.func @transform_2(%arg0: i32, %arg1: i32) -> (i32, i32, i32) {
    %c0_i32 = arith.constant 0 : i32
    %c0_i32_0 = arith.constant 0 : i32
    %c0_i32_1 = arith.constant 0 : i32
    return %arg1, %c0_i32, %c0_i32_0 : i32, i32, i32
  }
  func.func @transform_3(%arg0: i32, %arg1: i32) -> (i32, i32, i32) {
    %c0_i32 = arith.constant 0 : i32
    %c0_i32_0 = arith.constant 0 : i32
    %c0_i32_1 = arith.constant 0 : i32
    return %arg1, %c0_i32, %c0_i32_0 : i32, i32, i32
  }
  func.func @transform_4(%arg0: i32, %arg1: i32) -> (i32, i32, i32) {
    %c0_i32 = arith.constant 0 : i32
    %c0_i32_0 = arith.constant 0 : i32
    %c0_i32_1 = arith.constant 0 : i32
    return %arg0, %c0_i32, %c0_i32_0 : i32, i32, i32
  }
}

</mosaic_0001>

<llo_original>
// kernel: tpu_custom_call.1
$region0: #{tpu_custom_call.1}
  #allocation0 [shape = 'u32[]', space=smem, size = 0x4, offset = 0x4, fixed_abs, tag = 'smem constant byte address 0x4 - core index']
  #allocation1 [shape = 'u32[144,128]{1,0:T(1,128)}', space=vmem, size = 0x12000, scoped, tag = 'internal scratch']
  #allocation2 [shape = 'f32[8,32]{1,0:T(8,128)}', space=vmem, size = 0x1000, scoped, tag = 'scratch operand']
  %s0 = inlined_call_operand.vmem [shape: f32[2,8,32], index: 0, kind: input, shape index: {}]
  %s1 = inlined_call_operand.vmem [shape: bf16[2,32,96], index: 1, kind: input, shape index: {}]
  %s2 = inlined_call_operand.vmem [shape: bf16[2,32,64], index: 2, kind: input, shape index: {}]
  %s3 = inlined_call_operand.vmem [shape: bf16[2,64,32], index: 3, kind: input, shape index: {}]
  %s4 = inlined_call_operand.hbm [shape: f32[2,8,32], index: 4, kind: output, shape index: {}]
  %s5 = sld [smem:[#allocation0]]
  $region57: #{tpu_custom_call.1} parent=0
    _
  %s7 = ssub.s32 1, %s5
  %s8 = scalar_select 0, %s7, %s5
  $region1: #{tpu_custom_call.1} parent=0
    #allocation3 [shape = 'u8[8192]{0}', space=vmem, size = 0x2000, scoped, tag = 'output window, operand 0']
    #allocation4 [shape = 's32[2]{0}', space=sflag, size = 0x8, scoped, tag = 'scoped memory for tpu_custom_call.1']
    %9 = vsyncpa [#allocation4], 0
    %s10 = scalar_lea.sflag [#allocation4], 1
    %11 = vsyncpa %s10, 0
    loop: start=0, step=1, limit=6
    $region2: #{tpu_custom_call.1} parent=1 // loop_pre_header
      _
    $region3: #{tpu_custom_call.1} parent=1 // loop_header
      %s13 = sphi 0, %s17
      %p14 = scmp.ge.s32.totalorder %s13, 6
      %s20 = sphi 0, %s32
      %s21 = sphi 0, %s28
      %s22 = sphi 0, %s20
      %s23 = sphi 0, %s21
      %s24 = sphi 0, %s22
      %s25 = sphi 0, %s23
      %s35 = sphi 0, %s37
      %s38 = sphi 0, %s35
      %s39 = sphi 0, %s38
      %s55 = sphi 0, %s39
      %s61 = sphi 0, %s63
      %s64 = sphi 0, %s61
      %s65 = sphi 0, %s64
      %s81 = sphi 0, %s65
      %s87 = sphi 0, %s89
      %s90 = sphi 0, %s87
      %s91 = sphi 0, %s90
      %s107 = sphi 0, %s91
      %s113 = sphi 0, %s115
      %s116 = sphi 0, %s113
      %s117 = sphi 0, %s116
      %s133 = sphi 0, %s117
      %s139 = sphi 0, %s141
      %s142 = sphi 0, %s139
      %s143 = sphi 0, %s142
      %s159 = sphi 0, %s143
    $region4: #{tpu_custom_call.1} parent=1 // loop_header_branch
      %16 = sbr.rel (%p14) target = $region8
    $region5: #{tpu_custom_call.1} parent=1 // loop_body
      %s18 = ssub.s32 %s13, 1
      %s19 = ssub.s32 %s13, 2
      %s26 = sadd.s32 1, %s21
      %p27 = scmp.ge.s32.totalorder %s26, 2
      %s28 = scalar_select %p27, 0, %s26
      %s29 = sadd.s32 1, %s20
      %s30 = scalar_select %p27, %s29, %s20
      %p31 = scmp.ge.s32.totalorder %s30, 2
      %s32 = scalar_select %p31, 0, %s30
      %s33 = ssub.s32 %s20, %s32
      %p34 = scmp.eq.s32.totalorder %s33, 0
      %s36 = sadd.s32 %s35, 1
      %s37 = scalar_select %p34, %s35, %s36
      %p40 = pneg %p34
      %p41 = scmp.eq.s32.totalorder %s13, 3
      %p42 = por %p40, %p41
      %p43 = scmp.ne.s32.totalorder %s35, %s38
      %p44 = scmp.eq.s32.totalorder %s13, 0
      %p45 = por %p43, %p44
      %p46 = scmp.ne.s32.totalorder %s35, %s38
      %p47 = scmp.eq.s32.totalorder %s18, 3
      %p48 = por %p46, %p47
      %p49 = scmp.ne.s32.totalorder %s38, %s39
      %p50 = scmp.eq.s32.totalorder %s18, 0
      %p51 = por %p49, %p50
      %p52 = scmp.ne.s32.totalorder %s38, %s39
      %p53 = scmp.eq.s32.totalorder %s19, 3
      %p54 = por %p52, %p53
      %p56 = scmp.ne.s32.totalorder %s39, %s55
      %p57 = scmp.eq.s32.totalorder %s19, 0
      %p58 = por %p56, %p57
      %s59 = ssub.s32 %s21, %s28
      %p60 = scmp.eq.s32.totalorder %s59, 0
      %s62 = sadd.s32 %s61, 1
      %s63 = scalar_select %p60, %s61, %s62
      %p66 = pneg %p60
      %p67 = scmp.eq.s32.totalorder %s13, 3
      %p68 = por %p66, %p67
      %p69 = scmp.ne.s32.totalorder %s61, %s64
      %p70 = scmp.eq.s32.totalorder %s13, 0
      %p71 = por %p69, %p70
      %p72 = scmp.ne.s32.totalorder %s61, %s64
      %p73 = scmp.eq.s32.totalorder %s18, 3
      %p74 = por %p72, %p73
      %p75 = scmp.ne.s32.totalorder %s64, %s65
      %p76 = scmp.eq.s32.totalorder %s18, 0
      %p77 = por %p75, %p76
      %p78 = scmp.ne.s32.totalorder %s64, %s65
      %p79 = scmp.eq.s32.totalorder %s19, 3
      %p80 = por %p78, %p79
      %p82 = scmp.ne.s32.totalorder %s65, %s81
      %p83 = scmp.eq.s32.totalorder %s19, 0
      %p84 = por %p82, %p83
      %s85 = ssub.s32 %s21, %s28
      %p86 = scmp.eq.s32.totalorder %s85, 0
      %s88 = sadd.s32 %s87, 1
      %s89 = scalar_select %p86, %s87, %s88
      %p92 = pneg %p86
      %p93 = scmp.eq.s32.totalorder %s13, 3
      %p94 = por %p92, %p93
      %p95 = scmp.ne.s32.totalorder %s87, %s90
      %p96 = scmp.eq.s32.totalorder %s13, 0
      %p97 = por %p95, %p96
      %p98 = scmp.ne.s32.totalorder %s87, %s90
      %p99 = scmp.eq.s32.totalorder %s18, 3
      %p100 = por %p98, %p99
      %p101 = scmp.ne.s32.totalorder %s90, %s91
      %p102 = scmp.eq.s32.totalorder %s18, 0
      %p103 = por %p101, %p102
      %p104 = scmp.ne.s32.totalorder %s90, %s91
      %p105 = scmp.eq.s32.totalorder %s19, 3
      %p106 = por %p104, %p105
      %p108 = scmp.ne.s32.totalorder %s91, %s107
      %p109 = scmp.eq.s32.totalorder %s19, 0
      %p110 = por %p108, %p109
      %s111 = ssub.s32 %s21, %s28
      %p112 = scmp.eq.s32.totalorder %s111, 0
      %s114 = sadd.s32 %s113, 1
      %s115 = scalar_select %p112, %s113, %s114
      %p118 = pneg %p112
      %p119 = scmp.eq.s32.totalorder %s13, 3
      %p120 = por %p118, %p119
      %p121 = scmp.ne.s32.totalorder %s113, %s116
      %p122 = scmp.eq.s32.totalorder %s13, 0
      %p123 = por %p121, %p122
      %p124 = scmp.ne.s32.totalorder %s113, %s116
      %p125 = scmp.eq.s32.totalorder %s18, 3
      %p126 = por %p124, %p125
      %p127 = scmp.ne.s32.totalorder %s116, %s117
      %p128 = scmp.eq.s32.totalorder %s18, 0
      %p129 = por %p127, %p128
      %p130 = scmp.ne.s32.totalorder %s116, %s117
      %p131 = scmp.eq.s32.totalorder %s19, 3
      %p132 = por %p130, %p131
      %p134 = scmp.ne.s32.totalorder %s117, %s133
      %p135 = scmp.eq.s32.totalorder %s19, 0
      %p136 = por %p134, %p135
      %s137 = ssub.s32 %s20, %s32
      %p138 = scmp.eq.s32.totalorder %s137, 0
      %s140 = sadd.s32 %s139, 1
      %s141 = scalar_select %p138, %s139, %s140
      %p144 = pneg %p138
      %p145 = scmp.eq.s32.totalorder %s13, 3
      %p146 = por %p144, %p145
      %p147 = scmp.ne.s32.totalorder %s139, %s142
      %p148 = scmp.eq.s32.totalorder %s13, 0
      %p149 = por %p147, %p148
      %p150 = scmp.ne.s32.totalorder %s139, %s142
      %p151 = scmp.eq.s32.totalorder %s18, 3
      %p152 = por %p150, %p151
      %p153 = scmp.ne.s32.totalorder %s142, %s143
      %p154 = scmp.eq.s32.totalorder %s18, 0
      %p155 = por %p153, %p154
      %p156 = scmp.ne.s32.totalorder %s142, %s143
      %p157 = scmp.eq.s32.totalorder %s19, 3
      %p158 = por %p156, %p157
      %p160 = scmp.ne.s32.totalorder %s143, %s159
      %p161 = scmp.eq.s32.totalorder %s19, 0
      %p162 = por %p160, %p161
      %p163 = scmp.le.s32.totalorder 1, %s13
      %p164 = scmp.lt.s32.totalorder %s13, 5
      %p165 = pnand %p163, %p164
      %p166 = pneg %p165
      // Predicated region
      $region9: #{tpu_custom_call.1} parent=5 // pred_check
        _
      $region10: #{tpu_custom_call.1} parent=5 // pred_check_branch
        %168 = sbr.rel (%p165) target = $region12
      $region11: #{tpu_custom_call.1} parent=5 // pred_region
        %s169 = ssub.s32 %s13, 1
      $region12: #{tpu_custom_call.1} parent=5 // pred_fallthru
        _
      %p170 = scmp.lt.s32.totalorder %s13, 4
      // Predicated region
      $region13: #{tpu_custom_call.1} parent=5 // pred_check
        %p171 = pneg %p170
      $region14: #{tpu_custom_call.1} parent=5 // pred_check_branch
        %173 = sbr.rel (%p171) target = $region16
      $region15: #{tpu_custom_call.1} parent=5 // pred_region
        // Predicated region
        $region17: #{tpu_custom_call.1} parent=15 // pred_check
          %p174 = pneg %p45
        $region18: #{tpu_custom_call.1} parent=15 // pred_check_branch
          %176 = sbr.rel (%p174) target = $region20
        $region19: #{tpu_custom_call.1} parent=15 // pred_region
          %p177 = scmp.lt.s32.totalorder %s20, 1
          %s178 = scalar_select %p177, %s20, 1
          %s179 = smul.addr %s178, 8
          %s180 = scalar_lea.vmem %s0, %s179
        $region20: #{tpu_custom_call.1} parent=15 // pred_fallthru
          _
        // Predicated region
        $region21: #{tpu_custom_call.1} parent=15 // pred_check
          %p181 = pneg %p71
        $region22: #{tpu_custom_call.1} parent=15 // pred_check_branch
          %183 = sbr.rel (%p181) target = $region24
        $region23: #{tpu_custom_call.1} parent=15 // pred_region
          %p184 = scmp.lt.s32.totalorder %s21, 1
          %s185 = scalar_select %p184, %s21, 1
          %s186 = smul.addr %s185, 4
          %s187 = smul.addr %s186, 4
          %s188 = scalar_lea.vmem %s1, %s187
        $region24: #{tpu_custom_call.1} parent=15 // pred_fallthru
          _
        // Predicated region
        $region25: #{tpu_custom_call.1} parent=15 // pred_check
          %p189 = pneg %p97
        $region26: #{tpu_custom_call.1} parent=15 // pred_check_branch
          %191 = sbr.rel (%p189) target = $region28
        $region27: #{tpu_custom_call.1} parent=15 // pred_region
          %p192 = scmp.lt.s32.totalorder %s21, 1
          %s193 = scalar_select %p192, %s21, 1
          %s194 = smul.addr %s193, 4
          %s195 = smul.addr %s194, 4
          %s196 = scalar_lea.vmem %s2, %s195
        $region28: #{tpu_custom_call.1} parent=15 // pred_fallthru
          _
        // Predicated region
        $region29: #{tpu_custom_call.1} parent=15 // pred_check
          %p197 = pneg %p123
        $region30: #{tpu_custom_call.1} parent=15 // pred_check_branch
          %199 = sbr.rel (%p197) target = $region32
        $region31: #{tpu_custom_call.1} parent=15 // pred_region
          %p200 = scmp.lt.s32.totalorder %s21, 1
          %s201 = scalar_select %p200, %s21, 1
          %s202 = smul.addr %s201, 8
          %s203 = smul.addr %s202, 4
          %s204 = scalar_lea.vmem %s3, %s203
        $region32: #{tpu_custom_call.1} parent=15 // pred_fallthru
          _
      $region16: #{tpu_custom_call.1} parent=5 // pred_fallthru
        _
      %p205 = scmp.le.s32.totalorder 1, %s13
      %p206 = scmp.lt.s32.totalorder %s13, 5
      %p207 = pnand %p205, %p206
      %p208 = pneg %p207
      // Predicated region
      $region33: #{tpu_custom_call.1} parent=5 // pred_check
        _
      $region34: #{tpu_custom_call.1} parent=5 // pred_check_branch
        %210 = sbr.rel (%p207) target = $region36
      $region35: #{tpu_custom_call.1} parent=5 // pred_region
        %s211 = ssub.s32 %s13, 1
        %p212 = scmp.lt.s32.totalorder %s22, 1
        %s213 = scalar_select %p212, %s22, 1
        %s214 = smul.addr %s213, 8
        %s215 = scalar_lea.vmem %s0, %s214
        %p216 = pneg %p51
        %p217 = pneg %p48
        %p218 = scmp.lt.s32.totalorder %s23, 1
        %s219 = scalar_select %p218, %s23, 1
        %s220 = smul.addr %s219, 4
        %s221 = smul.addr %s220, 4
        %s222 = scalar_lea.vmem %s1, %s221
        %p223 = pneg %p77
        %p224 = pneg %p74
        %p225 = scmp.lt.s32.totalorder %s23, 1
        %s226 = scalar_select %p225, %s23, 1
        %s227 = smul.addr %s226, 4
        %s228 = smul.addr %s227, 4
        %s229 = scalar_lea.vmem %s2, %s228
        %p230 = pneg %p103
        %p231 = pneg %p100
        %p232 = scmp.lt.s32.totalorder %s23, 1
        %s233 = scalar_select %p232, %s23, 1
        %s234 = smul.addr %s233, 8
        %s235 = smul.addr %s234, 4
        %s236 = scalar_lea.vmem %s3, %s235
        %p237 = pneg %p129
        %p238 = pneg %p126
        %p239 = pneg %p155
        %p240 = pneg %p152
        %s241 = sand.u32 %s142, 1
        %s242 = scalar_lea.sflag [#allocation4], %s241
        %s243 = sand.u32 %s142, 1
        %s244 = smul.addr %s243, 8
        %s245 = scalar_lea.vmem [#allocation3], %s244
        %p246 = scmp.lt.s32.totalorder %s22, 1
        %s247 = scalar_select %p246, %s22, 1
        %s248 = smul.addr %s247, 8
        %s249 = scalar_lea.vmem %s0, %s248
        %p250 = scmp.lt.s32.totalorder %s23, 1
        %s251 = scalar_select %p250, %s23, 1
        %s252 = smul.addr %s251, 4
        %s253 = smul.addr %s252, 4
        %s254 = scalar_lea.vmem %s1, %s253
        %p255 = scmp.lt.s32.totalorder %s23, 1
        %s256 = scalar_select %p255, %s23, 1
        %s257 = smul.addr %s256, 4
        %s258 = smul.addr %s257, 4
        %s259 = scalar_lea.vmem %s2, %s258
        %p260 = scmp.lt.s32.totalorder %s23, 1
        %s261 = scalar_select %p260, %s23, 1
        %s262 = smul.addr %s261, 8
        %s263 = smul.addr %s262, 4
        %s264 = scalar_lea.vmem %s3, %s263
        %p266 = scmp.eq.s32.totalorder %s23, 0
        // Predicated region
        $region37: #{tpu_custom_call.1} parent=35 // pred_check
          %p267 = pneg %p266
        $region38: #{tpu_custom_call.1} parent=35 // pred_check_branch
          %269 = sbr.rel (%p267) target = $region40
        $region39: #{tpu_custom_call.1} parent=35 // pred_region
          %v270 = vld [vmem:[%s249] sm:$0xff]
          %vm271 = vcmask 261120
          %272 = vst.msk [vmem:[#allocation2] sm:$0xff] %vm271, %v270
        $region40: #{tpu_custom_call.1} parent=35 // pred_fallthru
          _
        %v273 = vld [vmem:[#allocation2] sm:$0xff]
        %v274 = vpack.c.bf16 %v273, %v273
        %v275 = vld [vmem:[%s254] sm:$0xf]
        %v276 = vld [vmem:[%s254 + $0x4] sm:$0xf]
        %v277 = vld [vmem:[%s254 + $0x8] sm:$0xf]
        %v278 = vld [vmem:[%s254 + $0xc] sm:$0xf]
        %v283 = vunpack.c.l.b16 %v275
        %v284 = vunpack.c.l.b16 %v276
        %v285 = vunpack.c.l.b16 %v277
        %v286 = vunpack.c.l.b16 %v278
        %v287 = vpack.c.b16 %v284, %v283
        %v288 = vpack.c.b16 %v286, %v285
        %vm291 = vcmask 261120
        %v293 = vsel %vm291, %v274, 0
        %295 = vmatprep.subr.bf16.mxu0 0
        %296 = vmatpush1.bf16.msra.mxu0 0
        %297 = vmatprep.subr.bf16.mxu0 0
        %298 = vmatpush1.bf16.msra.mxu0 0
        %299 = vmatprep.subr.bf16.mxu0 0
        %300 = vmatpush1.bf16.msra.mxu0 0
        %301 = vmatprep.subr.bf16.mxu0 0
        %302 = vmatpush1.bf16.msra.mxu0 0
        %303 = vmatprep.subr.bf16.mxu0 0
        %304 = vmatpush1.bf16.msra.mxu0 0
        %305 = vmatprep.subr.bf16.mxu0 0
        %306 = vmatpush1.bf16.msra.mxu0 0
        %307 = vmatprep.subr.bf16.mxu0 0
        %308 = vmatpush1.bf16.msra.mxu0 %v288
        %309 = vmatprep.subr.bf16.mxu0 0
        %310 = vmatpush1.bf16.msra.mxu0 %v287
        %311 = vmatprep.subr.bf16.mxu0 0
        %312 = vmatpush2.bf16.msra.mxu0 0
        %313 = vmatprep.subr.bf16.mxu0 0
        %314 = vmatpush2.bf16.msra.mxu0 0
        %315 = vmatprep.subr.bf16.mxu0 0
        %316 = vmatpush2.bf16.msra.mxu0 0
        %317 = vmatprep.subr.bf16.mxu0 0
        %318 = vmatpush2.bf16.msra.mxu0 0
        %319 = vmatprep.subr.bf16.mxu0 0
        %320 = vmatpush2.bf16.msra.mxu0 0
        %321 = vmatprep.subr.bf16.mxu0 0
        %322 = vmatpush2.bf16.msra.mxu0 0
        %323 = vmatprep.subr.bf16.mxu0 0
        %324 = vmatpush2.bf16.msra.mxu0 0
        %325 = vmatprep.subr.bf16.mxu0 0
        %326 = vmatpush2.bf16.msra.mxu0 0
        %327 = vmatprep.mubr.bf16.mxu0 0
        %328 = vmatmul.mubr.bf16.gmra.mxu0 %v293
        %v329 = vpop.f32.mrf.mxu0
        %v330 = vadd.f32 0.0, %v329
        %v331 = vpop.f32.mrf.mxu0
        %v332 = vpop.f32.mrf.mxu0
        %v333 = vpop.f32.mrf.mxu0
        %334 = vdwg.mxu0
        %v335 = vmul.f32 %v330, 0.35355338
        %v336 = vlaneseq
        %v337 = vshrl.u32 %v336, 7
        %v338 = vlaneseq
        %v339 = vand.u32 %v338, 127
        %vm340 = vcmp.gt.s32.totalorder %v339, %v337
        %v341 = vsel %vm340, -1e+30, 0.0
        %343 = vrot.lane.b32.xlu0 %v330, 96
        %v344 = vpop.permute.xlu0 %343
        %vm345 = vcmask 64512
        %v347 = vsel %vm345, %v335, 0
        %v349 = vsel %vm345, %v344, 0
        %351 = vmatprep.subr.mxu0 0.0
        %352 = vmatpush1.xpose.msra.mxu0 0.0
        %353 = vmatprep.subr.mxu0 0.0
        %354 = vmatpush1.xpose.msra.mxu0 0.0
        %355 = vmatprep.subr.mxu0 0.0
        %356 = vmatpush1.xpose.msra.mxu0 0.0
        %357 = vmatprep.subr.mxu0 0.0
        %358 = vmatpush1.xpose.msra.mxu0 0.0
        %359 = vmatprep.subr.mxu0 0.0
        %360 = vmatpush1.xpose.msra.mxu0 0.0
        %361 = vmatprep.subr.mxu0 0.0
        %362 = vmatpush1.xpose.msra.mxu0 0.0
        %363 = vmatprep.subr.mxu0 0.0
        %364 = vmatpush1.xpose.msra.mxu0 0.0
        %365 = vmatprep.subr.mxu0 0.0
        %366 = vmatpush1.xpose.msra.mxu0 0.0
        %367 = vmatprep.subr.mxu0 0.0
        %368 = vmatpush1.xpose.msra.mxu0 0.0
        %369 = vmatprep.subr.mxu0 0.0
        %370 = vmatpush1.xpose.msra.mxu0 0.0
        %371 = vmatprep.subr.mxu0 0.0
        %372 = vmatpush1.xpose.msra.mxu0 0.0
        %373 = vmatprep.subr.mxu0 0.0
        %374 = vmatpush1.xpose.msra.mxu0 0.0
        %375 = vmatprep.subr.mxu0 0.0
        %376 = vmatpush1.xpose.msra.mxu0 0.0
        %377 = vmatprep.subr.mxu0 0.0
        %378 = vmatpush1.xpose.msra.mxu0 0.0
        %379 = vmatprep.subr.mxu0 0.0
        %380 = vmatpush1.xpose.msra.mxu0 0.0
        %381 = vmatprep.subr.mxu0 0.0
        %382 = vmatpush1.xpose.msra.mxu0 %v349
        %383 = vmatprep.subr.mxu0 0.0
        %384 = vmatpush2.xpose.msra.mxu0 0.0
        %385 = vmatprep.subr.mxu0 0.0
        %386 = vmatpush2.xpose.msra.mxu0 0.0
        %387 = vmatprep.subr.mxu0 0.0
        %388 = vmatpush2.xpose.msra.mxu0 0.0
        %389 = vmatprep.subr.mxu0 0.0
        %390 = vmatpush2.xpose.msra.mxu0 0.0
        %391 = vmatprep.subr.mxu0 0.0
        %392 = vmatpush2.xpose.msra.mxu0 0.0
        %393 = vmatprep.subr.mxu0 0.0
        %394 = vmatpush2.xpose.msra.mxu0 0.0
        %395 = vmatprep.subr.mxu0 0.0
        %396 = vmatpush2.xpose.msra.mxu0 0.0
        %397 = vmatprep.subr.mxu0 0.0
        %398 = vmatpush2.xpose.msra.mxu0 0.0
        %399 = vmatprep.subr.mxu0 0.0
        %400 = vmatpush2.xpose.msra.mxu0 0.0
        %401 = vmatprep.subr.mxu0 0.0
        %402 = vmatpush2.xpose.msra.mxu0 0.0
        %403 = vmatprep.subr.mxu0 0.0
        %404 = vmatpush2.xpose.msra.mxu0 0.0
        %405 = vmatprep.subr.mxu0 0.0
        %406 = vmatpush2.xpose.msra.mxu0 0.0
        %407 = vmatprep.subr.mxu0 0.0
        %408 = vmatpush2.xpose.msra.mxu0 0.0
        %409 = vmatprep.subr.mxu0 0.0
        %410 = vmatpush2.xpose.msra.mxu0 0.0
        %411 = vmatprep.subr.mxu0 0.0
        %412 = vmatpush2.xpose.msra.mxu0 0.0
        %413 = vmatprep.subr.mxu0 0.0
        %414 = vmatpush2.xpose.msra.mxu0 0.0
        %415 = vmatprep.mubr.f32.mxu0 0.0
        %416 = vmatmul.mubr.f32.gmra.mxu0 %v347
        %v417 = vpop.f32.mrf.mxu0
        %v418 = vadd.f32 %v341, %v417
        %v419 = vpop.f32.mrf.mxu0
        %420 = vdwg.mxu0
        %v421 = vsel %vm345, %v418, -inf
        %422 = vmax.xlane.f32.xlu0 %v421
        %v423 = vpop.xlane.xlu0 %422
        %v424 = vsub.f32 %v418, %v423
        %v425 = vmul.f32 %v424, 1.442695
        %v426 = vpow.pop %v425
        %v427 = vsel %vm345, %v426, 0.0
        %428 = vadd.xlane.f32.xlu0 %v427
        %v429 = vpop.xlane.xlu0 %428
        %v430 = vrcp.pop %v429
        %v431 = vmul.f32 %v426, %v430
        %432 = vrot.lane.b32.xlu0 %v330, 64
        %v433 = vpop.permute.xlu0 %432
        %v436 = vsel %vm345, %v431, 0
        %438 = vmatprep.subr.mxu0 0.0
        %439 = vmatpush1.msra.mxu0 0.0
        %440 = vmatprep.subr.mxu0 0.0
        %441 = vmatpush1.msra.mxu0 0.0
        %442 = vmatprep.subr.mxu0 0.0
        %443 = vmatpush1.msra.mxu0 0.0
        %444 = vmatprep.subr.mxu0 0.0
        %445 = vmatpush1.msra.mxu0 0.0
        %446 = vmatprep.subr.mxu0 0.0
        %447 = vmatpush1.msra.mxu0 0.0
        %448 = vmatprep.subr.mxu0 0.0
        %449 = vmatpush1.msra.mxu0 0.0
        %450 = vmatprep.subr.mxu0 0.0
        %451 = vmatpush1.msra.mxu0 0.0
        %452 = vmatprep.subr.mxu0 0.0
        %453 = vmatpush1.msra.mxu0 0.0
        %454 = vmatprep.subr.mxu0 0.0
        %455 = vmatpush1.msra.mxu0 0.0
        %456 = vmatprep.subr.mxu0 0.0
        %457 = vmatpush1.msra.mxu0 0.0
        %458 = vmatprep.subr.mxu0 0.0
        %459 = vmatpush1.msra.mxu0 0.0
        %460 = vmatprep.subr.mxu0 0.0
        %461 = vmatpush1.msra.mxu0 0.0
        %462 = vmatprep.subr.mxu0 0.0
        %463 = vmatpush1.msra.mxu0 0.0
        %464 = vmatprep.subr.mxu0 0.0
        %465 = vmatpush1.msra.mxu0 0.0
        %466 = vmatprep.subr.mxu0 0.0
        %467 = vmatpush1.msra.mxu0 0.0
        %468 = vmatprep.subr.mxu0 0.0
        %469 = vmatpush1.msra.mxu0 %v433
        %470 = vmatprep.subr.mxu0 0.0
        %471 = vmatpush2.msra.mxu0 0.0
        %472 = vmatprep.subr.mxu0 0.0
        %473 = vmatpush2.msra.mxu0 0.0
        %474 = vmatprep.subr.mxu0 0.0
        %475 = vmatpush2.msra.mxu0 0.0
        %476 = vmatprep.subr.mxu0 0.0
        %477 = vmatpush2.msra.mxu0 0.0
        %478 = vmatprep.subr.mxu0 0.0
        %479 = vmatpush2.msra.mxu0 0.0
        %480 = vmatprep.subr.mxu0 0.0
        %481 = vmatpush2.msra.mxu0 0.0
        %482 = vmatprep.subr.mxu0 0.0
        %483 = vmatpush2.msra.mxu0 0.0
        %484 = vmatprep.subr.mxu0 0.0
        %485 = vmatpush2.msra.mxu0 0.0
        %486 = vmatprep.subr.mxu0 0.0
        %487 = vmatpush2.msra.mxu0 0.0
        %488 = vmatprep.subr.mxu0 0.0
        %489 = vmatpush2.msra.mxu0 0.0
        %490 = vmatprep.subr.mxu0 0.0
        %491 = vmatpush2.msra.mxu0 0.0
        %492 = vmatprep.subr.mxu0 0.0
        %493 = vmatpush2.msra.mxu0 0.0
        %494 = vmatprep.subr.mxu0 0.0
        %495 = vmatpush2.msra.mxu0 0.0
        %496 = vmatprep.subr.mxu0 0.0
        %497 = vmatpush2.msra.mxu0 0.0
        %498 = vmatprep.subr.mxu0 0.0
        %499 = vmatpush2.msra.mxu0 0.0
        %500 = vmatprep.subr.mxu0 0.0
        %501 = vmatpush2.msra.mxu0 0.0
        %502 = vmatprep.mubr.f32.mxu0 0.0
        %503 = vmatmul.mubr.f32.gmra.mxu0 %v436
        %v504 = vpop.f32.mrf.mxu0
        %v505 = vadd.f32 0.0, %v504
        %v506 = vpop.f32.mrf.mxu0
        %507 = vdwg.mxu0
        %508 = vrot.lane.b32.xlu0 %v335, 120
        %v509 = vpop.permute.xlu0 %508
        %510 = vrot.lane.b32.xlu0 %v330, 88
        %v511 = vpop.permute.xlu0 %510
        %v512 = vsel %vm345, %v509, 0
        %v514 = vsel %vm345, %v511, 0
        %516 = vmatprep.subr.mxu0 0.0
        %517 = vmatpush1.xpose.msra.mxu0 0.0
        %518 = vmatprep.subr.mxu0 0.0
        %519 = vmatpush1.xpose.msra.mxu0 0.0
        %520 = vmatprep.subr.mxu0 0.0
        %521 = vmatpush1.xpose.msra.mxu0 0.0
        %522 = vmatprep.subr.mxu0 0.0
        %523 = vmatpush1.xpose.msra.mxu0 0.0
        %524 = vmatprep.subr.mxu0 0.0
        %525 = vmatpush1.xpose.msra.mxu0 0.0
        %526 = vmatprep.subr.mxu0 0.0
        %527 = vmatpush1.xpose.msra.mxu0 0.0
        %528 = vmatprep.subr.mxu0 0.0
        %529 = vmatpush1.xpose.msra.mxu0 0.0
        %530 = vmatprep.subr.mxu0 0.0
        %531 = vmatpush1.xpose.msra.mxu0 0.0
        %532 = vmatprep.subr.mxu0 0.0
        %533 = vmatpush1.xpose.msra.mxu0 0.0
        %534 = vmatprep.subr.mxu0 0.0
        %535 = vmatpush1.xpose.msra.mxu0 0.0
        %536 = vmatprep.subr.mxu0 0.0
        %537 = vmatpush1.xpose.msra.mxu0 0.0
        %538 = vmatprep.subr.mxu0 0.0
        %539 = vmatpush1.xpose.msra.mxu0 0.0
        %540 = vmatprep.subr.mxu0 0.0
        %541 = vmatpush1.xpose.msra.mxu0 0.0
        %542 = vmatprep.subr.mxu0 0.0
        %543 = vmatpush1.xpose.msra.mxu0 0.0
        %544 = vmatprep.subr.mxu0 0.0
        %545 = vmatpush1.xpose.msra.mxu0 0.0
        %546 = vmatprep.subr.mxu0 0.0
        %547 = vmatpush1.xpose.msra.mxu0 %v514
        %548 = vmatprep.subr.mxu0 0.0
        %549 = vmatpush2.xpose.msra.mxu0 0.0
        %550 = vmatprep.subr.mxu0 0.0
        %551 = vmatpush2.xpose.msra.mxu0 0.0
        %552 = vmatprep.subr.mxu0 0.0
        %553 = vmatpush2.xpose.msra.mxu0 0.0
        %554 = vmatprep.subr.mxu0 0.0
        %555 = vmatpush2.xpose.msra.mxu0 0.0
        %556 = vmatprep.subr.mxu0 0.0
        %557 = vmatpush2.xpose.msra.mxu0 0.0
        %558 = vmatprep.subr.mxu0 0.0
        %559 = vmatpush2.xpose.msra.mxu0 0.0
        %560 = vmatprep.subr.mxu0 0.0
        %561 = vmatpush2.xpose.msra.mxu0 0.0
        %562 = vmatprep.subr.mxu0 0.0
        %563 = vmatpush2.xpose.msra.mxu0 0.0
        %564 = vmatprep.subr.mxu0 0.0
        %565 = vmatpush2.xpose.msra.mxu0 0.0
        %566 = vmatprep.subr.mxu0 0.0
        %567 = vmatpush2.xpose.msra.mxu0 0.0
        %568 = vmatprep.subr.mxu0 0.0
        %569 = vmatpush2.xpose.msra.mxu0 0.0
        %570 = vmatprep.subr.mxu0 0.0
        %571 = vmatpush2.xpose.msra.mxu0 0.0
        %572 = vmatprep.subr.mxu0 0.0
        %573 = vmatpush2.xpose.msra.mxu0 0.0
        %574 = vmatprep.subr.mxu0 0.0
        %575 = vmatpush2.xpose.msra.mxu0 0.0
        %576 = vmatprep.subr.mxu0 0.0
        %577 = vmatpush2.xpose.msra.mxu0 0.0
        %578 = vmatprep.subr.mxu0 0.0
        %579 = vmatpush2.xpose.msra.mxu0 0.0
        %580 = vmatprep.mubr.f32.mxu0 0.0
        %581 = vmatmul.mubr.f32.gmra.mxu0 %v512
        %v582 = vpop.f32.mrf.mxu0
        %v583 = vadd.f32 %v341, %v582
        %v584 = vpop.f32.mrf.mxu0
        %585 = vdwg.mxu0
        %v586 = vsel %vm345, %v583, -inf
        %587 = vmax.xlane.f32.xlu0 %v586
        %v588 = vpop.xlane.xlu0 %587
        %v589 = vsub.f32 %v583, %v588
        %v590 = vmul.f32 %v589, 1.442695
        %v591 = vpow.pop %v590
        %v592 = vsel %vm345, %v591, 0.0
        %593 = vadd.xlane.f32.xlu0 %v592
        %v594 = vpop.xlane.xlu0 %593
        %v595 = vrcp.pop %v594
        %v596 = vmul.f32 %v591, %v595
        %597 = vrot.lane.b32.xlu0 %v330, 56
        %v598 = vpop.permute.xlu0 %597
        %v601 = vsel %vm345, %v596, 0
        %603 = vmatprep.subr.mxu0 0.0
        %604 = vmatpush1.msra.mxu0 0.0
        %605 = vmatprep.subr.mxu0 0.0
        %606 = vmatpush1.msra.mxu0 0.0
        %607 = vmatprep.subr.mxu0 0.0
        %608 = vmatpush1.msra.mxu0 0.0
        %609 = vmatprep.subr.mxu0 0.0
        %610 = vmatpush1.msra.mxu0 0.0
        %611 = vmatprep.subr.mxu0 0.0
        %612 = vmatpush1.msra.mxu0 0.0
        %613 = vmatprep.subr.mxu0 0.0
        %614 = vmatpush1.msra.mxu0 0.0
        %615 = vmatprep.subr.mxu0 0.0
        %616 = vmatpush1.msra.mxu0 0.0
        %617 = vmatprep.subr.mxu0 0.0
        %618 = vmatpush1.msra.mxu0 0.0
        %619 = vmatprep.subr.mxu0 0.0
        %620 = vmatpush1.msra.mxu0 0.0
        %621 = vmatprep.subr.mxu0 0.0
        %622 = vmatpush1.msra.mxu0 0.0
        %623 = vmatprep.subr.mxu0 0.0
        %624 = vmatpush1.msra.mxu0 0.0
        %625 = vmatprep.subr.mxu0 0.0
        %626 = vmatpush1.msra.mxu0 0.0
        %627 = vmatprep.subr.mxu0 0.0
        %628 = vmatpush1.msra.mxu0 0.0
        %629 = vmatprep.subr.mxu0 0.0
        %630 = vmatpush1.msra.mxu0 0.0
        %631 = vmatprep.subr.mxu0 0.0
        %632 = vmatpush1.msra.mxu0 0.0
        %633 = vmatprep.subr.mxu0 0.0
        %634 = vmatpush1.msra.mxu0 %v598
        %635 = vmatprep.subr.mxu0 0.0
        %636 = vmatpush2.msra.mxu0 0.0
        %637 = vmatprep.subr.mxu0 0.0
        %638 = vmatpush2.msra.mxu0 0.0
        %639 = vmatprep.subr.mxu0 0.0
        %640 = vmatpush2.msra.mxu0 0.0
        %641 = vmatprep.subr.mxu0 0.0
        %642 = vmatpush2.msra.mxu0 0.0
        %643 = vmatprep.subr.mxu0 0.0
        %644 = vmatpush2.msra.mxu0 0.0
        %645 = vmatprep.subr.mxu0 0.0
        %646 = vmatpush2.msra.mxu0 0.0
        %647 = vmatprep.subr.mxu0 0.0
        %648 = vmatpush2.msra.mxu0 0.0
        %649 = vmatprep.subr.mxu0 0.0
        %650 = vmatpush2.msra.mxu0 0.0
        %651 = vmatprep.subr.mxu0 0.0
        %652 = vmatpush2.msra.mxu0 0.0
        %653 = vmatprep.subr.mxu0 0.0
        %654 = vmatpush2.msra.mxu0 0.0
        %655 = vmatprep.subr.mxu0 0.0
        %656 = vmatpush2.msra.mxu0 0.0
        %657 = vmatprep.subr.mxu0 0.0
        %658 = vmatpush2.msra.mxu0 0.0
        %659 = vmatprep.subr.mxu0 0.0
        %660 = vmatpush2.msra.mxu0 0.0
        %661 = vmatprep.subr.mxu0 0.0
        %662 = vmatpush2.msra.mxu0 0.0
        %663 = vmatprep.subr.mxu0 0.0
        %664 = vmatpush2.msra.mxu0 0.0
        %665 = vmatprep.subr.mxu0 0.0
        %666 = vmatpush2.msra.mxu0 0.0
        %667 = vmatprep.mubr.f32.mxu0 0.0
        %668 = vmatmul.mubr.f32.gmra.mxu0 %v601
        %v669 = vpop.f32.mrf.mxu0
        %v670 = vadd.f32 0.0, %v669
        %v671 = vpop.f32.mrf.mxu0
        %672 = vdwg.mxu0
        %673 = vrot.lane.b32.xlu0 %v335, 112
        %v674 = vpop.permute.xlu0 %673
        %675 = vrot.lane.b32.xlu0 %v330, 80
        %v676 = vpop.permute.xlu0 %675
        %v677 = vsel %vm345, %v674, 0
        %v679 = vsel %vm345, %v676, 0
        %681 = vmatprep.subr.mxu0 0.0
        %682 = vmatpush1.xpose.msra.mxu0 0.0
        %683 = vmatprep.subr.mxu0 0.0
        %684 = vmatpush1.xpose.msra.mxu0 0.0
        %685 = vmatprep.subr.mxu0 0.0
        %686 = vmatpush1.xpose.msra.mxu0 0.0
        %687 = vmatprep.subr.mxu0 0.0
        %688 = vmatpush1.xpose.msra.mxu0 0.0
        %689 = vmatprep.subr.mxu0 0.0
        %690 = vmatpush1.xpose.msra.mxu0 0.0
        %691 = vmatprep.subr.mxu0 0.0
        %692 = vmatpush1.xpose.msra.mxu0 0.0
        %693 = vmatprep.subr.mxu0 0.0
        %694 = vmatpush1.xpose.msra.mxu0 0.0
        %695 = vmatprep.subr.mxu0 0.0
        %696 = vmatpush1.xpose.msra.mxu0 0.0
        %697 = vmatprep.subr.mxu0 0.0
        %698 = vmatpush1.xpose.msra.mxu0 0.0
        %699 = vmatprep.subr.mxu0 0.0
        %700 = vmatpush1.xpose.msra.mxu0 0.0
        %701 = vmatprep.subr.mxu0 0.0
        %702 = vmatpush1.xpose.msra.mxu0 0.0
        %703 = vmatprep.subr.mxu0 0.0
        %704 = vmatpush1.xpose.msra.mxu0 0.0
        %705 = vmatprep.subr.mxu0 0.0
        %706 = vmatpush1.xpose.msra.mxu0 0.0
        %707 = vmatprep.subr.mxu0 0.0
        %708 = vmatpush1.xpose.msra.mxu0 0.0
        %709 = vmatprep.subr.mxu0 0.0
        %710 = vmatpush1.xpose.msra.mxu0 0.0
        %711 = vmatprep.subr.mxu0 0.0
        %712 = vmatpush1.xpose.msra.mxu0 %v679
        %713 = vmatprep.subr.mxu0 0.0
        %714 = vmatpush2.xpose.msra.mxu0 0.0
        %715 = vmatprep.subr.mxu0 0.0
        %716 = vmatpush2.xpose.msra.mxu0 0.0
        %717 = vmatprep.subr.mxu0 0.0
        %718 = vmatpush2.xpose.msra.mxu0 0.0
        %719 = vmatprep.subr.mxu0 0.0
        %720 = vmatpush2.xpose.msra.mxu0 0.0
        %721 = vmatprep.subr.mxu0 0.0
        %722 = vmatpush2.xpose.msra.mxu0 0.0
        %723 = vmatprep.subr.mxu0 0.0
        %724 = vmatpush2.xpose.msra.mxu0 0.0
        %725 = vmatprep.subr.mxu0 0.0
        %726 = vmatpush2.xpose.msra.mxu0 0.0
        %727 = vmatprep.subr.mxu0 0.0
        %728 = vmatpush2.xpose.msra.mxu0 0.0
        %729 = vmatprep.subr.mxu0 0.0
        %730 = vmatpush2.xpose.msra.mxu0 0.0
        %731 = vmatprep.subr.mxu0 0.0
        %732 = vmatpush2.xpose.msra.mxu0 0.0
        %733 = vmatprep.subr.mxu0 0.0
        %734 = vmatpush2.xpose.msra.mxu0 0.0
        %735 = vmatprep.subr.mxu0 0.0
        %736 = vmatpush2.xpose.msra.mxu0 0.0
        %737 = vmatprep.subr.mxu0 0.0
        %738 = vmatpush2.xpose.msra.mxu0 0.0
        %739 = vmatprep.subr.mxu0 0.0
        %740 = vmatpush2.xpose.msra.mxu0 0.0
        %741 = vmatprep.subr.mxu0 0.0
        %742 = vmatpush2.xpose.msra.mxu0 0.0
        %743 = vmatprep.subr.mxu0 0.0
        %744 = vmatpush2.xpose.msra.mxu0 0.0
        %745 = vmatprep.mubr.f32.mxu0 0.0
        %746 = vmatmul.mubr.f32.gmra.mxu0 %v677
        %v747 = vpop.f32.mrf.mxu0
        %v748 = vadd.f32 %v341, %v747
        %v749 = vpop.f32.mrf.mxu0
        %750 = vdwg.mxu0
        %v751 = vsel %vm345, %v748, -inf
        %752 = vmax.xlane.f32.xlu0 %v751
        %v753 = vpop.xlane.xlu0 %752
        %v754 = vsub.f32 %v748, %v753
        %v755 = vmul.f32 %v754, 1.442695
        %v756 = vpow.pop %v755
        %v757 = vsel %vm345, %v756, 0.0
        %758 = vadd.xlane.f32.xlu0 %v757
        %v759 = vpop.xlane.xlu0 %758
        %v760 = vrcp.pop %v759
        %v761 = vmul.f32 %v756, %v760
        %762 = vrot.lane.b32.xlu0 %v330, 48
        %v763 = vpop.permute.xlu0 %762
        %v766 = vsel %vm345, %v761, 0
        %768 = vmatprep.subr.mxu0 0.0
        %769 = vmatpush1.msra.mxu0 0.0
        %770 = vmatprep.subr.mxu0 0.0
        %771 = vmatpush1.msra.mxu0 0.0
        %772 = vmatprep.subr.mxu0 0.0
        %773 = vmatpush1.msra.mxu0 0.0
        %774 = vmatprep.subr.mxu0 0.0
        %775 = vmatpush1.msra.mxu0 0.0
        %776 = vmatprep.subr.mxu0 0.0
        %777 = vmatpush1.msra.mxu0 0.0
        %778 = vmatprep.subr.mxu0 0.0
        %779 = vmatpush1.msra.mxu0 0.0
        %780 = vmatprep.subr.mxu0 0.0
        %781 = vmatpush1.msra.mxu0 0.0
        %782 = vmatprep.subr.mxu0 0.0
        %783 = vmatpush1.msra.mxu0 0.0
        %784 = vmatprep.subr.mxu0 0.0
        %785 = vmatpush1.msra.mxu0 0.0
        %786 = vmatprep.subr.mxu0 0.0
        %787 = vmatpush1.msra.mxu0 0.0
        %788 = vmatprep.subr.mxu0 0.0
        %789 = vmatpush1.msra.mxu0 0.0
        %790 = vmatprep.subr.mxu0 0.0
        %791 = vmatpush1.msra.mxu0 0.0
        %792 = vmatprep.subr.mxu0 0.0
        %793 = vmatpush1.msra.mxu0 0.0
        %794 = vmatprep.subr.mxu0 0.0
        %795 = vmatpush1.msra.mxu0 0.0
        %796 = vmatprep.subr.mxu0 0.0
        %797 = vmatpush1.msra.mxu0 0.0
        %798 = vmatprep.subr.mxu0 0.0
        %799 = vmatpush1.msra.mxu0 %v763
        %800 = vmatprep.subr.mxu0 0.0
        %801 = vmatpush2.msra.mxu0 0.0
        %802 = vmatprep.subr.mxu0 0.0
        %803 = vmatpush2.msra.mxu0 0.0
        %804 = vmatprep.subr.mxu0 0.0
        %805 = vmatpush2.msra.mxu0 0.0
        %806 = vmatprep.subr.mxu0 0.0
        %807 = vmatpush2.msra.mxu0 0.0
        %808 = vmatprep.subr.mxu0 0.0
        %809 = vmatpush2.msra.mxu0 0.0
        %810 = vmatprep.subr.mxu0 0.0
        %811 = vmatpush2.msra.mxu0 0.0
        %812 = vmatprep.subr.mxu0 0.0
        %813 = vmatpush2.msra.mxu0 0.0
        %814 = vmatprep.subr.mxu0 0.0
        %815 = vmatpush2.msra.mxu0 0.0
        %816 = vmatprep.subr.mxu0 0.0
        %817 = vmatpush2.msra.mxu0 0.0
        %818 = vmatprep.subr.mxu0 0.0
        %819 = vmatpush2.msra.mxu0 0.0
        %820 = vmatprep.subr.mxu0 0.0
        %821 = vmatpush2.msra.mxu0 0.0
        %822 = vmatprep.subr.mxu0 0.0
        %823 = vmatpush2.msra.mxu0 0.0
        %824 = vmatprep.subr.mxu0 0.0
        %825 = vmatpush2.msra.mxu0 0.0
        %826 = vmatprep.subr.mxu0 0.0
        %827 = vmatpush2.msra.mxu0 0.0
        %828 = vmatprep.subr.mxu0 0.0
        %829 = vmatpush2.msra.mxu0 0.0
        %830 = vmatprep.subr.mxu0 0.0
        %831 = vmatpush2.msra.mxu0 0.0
        %832 = vmatprep.mubr.f32.mxu0 0.0
        %833 = vmatmul.mubr.f32.gmra.mxu0 %v766
        %v834 = vpop.f32.mrf.mxu0
        %v835 = vadd.f32 0.0, %v834
        %v836 = vpop.f32.mrf.mxu0
        %837 = vdwg.mxu0
        %838 = vrot.lane.b32.xlu0 %v335, 104
        %v839 = vpop.permute.xlu0 %838
        %840 = vrot.lane.b32.xlu0 %v330, 72
        %v841 = vpop.permute.xlu0 %840
        %v842 = vsel %vm345, %v839, 0
        %v844 = vsel %vm345, %v841, 0
        %846 = vmatprep.subr.mxu0 0.0
        %847 = vmatpush1.xpose.msra.mxu0 0.0
        %848 = vmatprep.subr.mxu0 0.0
        %849 = vmatpush1.xpose.msra.mxu0 0.0
        %850 = vmatprep.subr.mxu0 0.0
        %851 = vmatpush1.xpose.msra.mxu0 0.0
        %852 = vmatprep.subr.mxu0 0.0
        %853 = vmatpush1.xpose.msra.mxu0 0.0
        %854 = vmatprep.subr.mxu0 0.0
        %855 = vmatpush1.xpose.msra.mxu0 0.0
        %856 = vmatprep.subr.mxu0 0.0
        %857 = vmatpush1.xpose.msra.mxu0 0.0
        %858 = vmatprep.subr.mxu0 0.0
        %859 = vmatpush1.xpose.msra.mxu0 0.0
        %860 = vmatprep.subr.mxu0 0.0
        %861 = vmatpush1.xpose.msra.mxu0 0.0
        %862 = vmatprep.subr.mxu0 0.0
        %863 = vmatpush1.xpose.msra.mxu0 0.0
        %864 = vmatprep.subr.mxu0 0.0
        %865 = vmatpush1.xpose.msra.mxu0 0.0
        %866 = vmatprep.subr.mxu0 0.0
        %867 = vmatpush1.xpose.msra.mxu0 0.0
        %868 = vmatprep.subr.mxu0 0.0
        %869 = vmatpush1.xpose.msra.mxu0 0.0
        %870 = vmatprep.subr.mxu0 0.0
        %871 = vmatpush1.xpose.msra.mxu0 0.0
        %872 = vmatprep.subr.mxu0 0.0
        %873 = vmatpush1.xpose.msra.mxu0 0.0
        %874 = vmatprep.subr.mxu0 0.0
        %875 = vmatpush1.xpose.msra.mxu0 0.0
        %876 = vmatprep.subr.mxu0 0.0
        %877 = vmatpush1.xpose.msra.mxu0 %v844
        %878 = vmatprep.subr.mxu0 0.0
        %879 = vmatpush2.xpose.msra.mxu0 0.0
        %880 = vmatprep.subr.mxu0 0.0
        %881 = vmatpush2.xpose.msra.mxu0 0.0
        %882 = vmatprep.subr.mxu0 0.0
        %883 = vmatpush2.xpose.msra.mxu0 0.0
        %884 = vmatprep.subr.mxu0 0.0
        %885 = vmatpush2.xpose.msra.mxu0 0.0
        %886 = vmatprep.subr.mxu0 0.0
        %887 = vmatpush2.xpose.msra.mxu0 0.0
        %888 = vmatprep.subr.mxu0 0.0
        %889 = vmatpush2.xpose.msra.mxu0 0.0
        %890 = vmatprep.subr.mxu0 0.0
        %891 = vmatpush2.xpose.msra.mxu0 0.0
        %892 = vmatprep.subr.mxu0 0.0
        %893 = vmatpush2.xpose.msra.mxu0 0.0
        %894 = vmatprep.subr.mxu0 0.0
        %895 = vmatpush2.xpose.msra.mxu0 0.0
        %896 = vmatprep.subr.mxu0 0.0
        %897 = vmatpush2.xpose.msra.mxu0 0.0
        %898 = vmatprep.subr.mxu0 0.0
        %899 = vmatpush2.xpose.msra.mxu0 0.0
        %900 = vmatprep.subr.mxu0 0.0
        %901 = vmatpush2.xpose.msra.mxu0 0.0
        %902 = vmatprep.subr.mxu0 0.0
        %903 = vmatpush2.xpose.msra.mxu0 0.0
        %904 = vmatprep.subr.mxu0 0.0
        %905 = vmatpush2.xpose.msra.mxu0 0.0
        %906 = vmatprep.subr.mxu0 0.0
        %907 = vmatpush2.xpose.msra.mxu0 0.0
        %908 = vmatprep.subr.mxu0 0.0
        %909 = vmatpush2.xpose.msra.mxu0 0.0
        %910 = vmatprep.mubr.f32.mxu0 0.0
        %911 = vmatmul.mubr.f32.gmra.mxu0 %v842
        %v912 = vpop.f32.mrf.mxu0
        %v913 = vadd.f32 %v341, %v912
        %v914 = vpop.f32.mrf.mxu0
        %915 = vdwg.mxu0
        %v916 = vsel %vm345, %v913, -inf
        %917 = vmax.xlane.f32.xlu0 %v916
        %v918 = vpop.xlane.xlu0 %917
        %v919 = vsub.f32 %v913, %v918
        %v920 = vmul.f32 %v919, 1.442695
        %v921 = vpow.pop %v920
        %v922 = vsel %vm345, %v921, 0.0
        %923 = vadd.xlane.f32.xlu0 %v922
        %v924 = vpop.xlane.xlu0 %923
        %v925 = vrcp.pop %v924
        %v926 = vmul.f32 %v921, %v925
        %927 = vrot.lane.b32.xlu0 %v330, 40
        %v928 = vpop.permute.xlu0 %927
        %v931 = vsel %vm345, %v926, 0
        %933 = vmatprep.subr.mxu0 0.0
        %934 = vmatpush1.msra.mxu0 0.0
        %935 = vmatprep.subr.mxu0 0.0
        %936 = vmatpush1.msra.mxu0 0.0
        %937 = vmatprep.subr.mxu0 0.0
        %938 = vmatpush1.msra.mxu0 0.0
        %939 = vmatprep.subr.mxu0 0.0
        %940 = vmatpush1.msra.mxu0 0.0
        %941 = vmatprep.subr.mxu0 0.0
        %942 = vmatpush1.msra.mxu0 0.0
        %943 = vmatprep.subr.mxu0 0.0
        %944 = vmatpush1.msra.mxu0 0.0
        %945 = vmatprep.subr.mxu0 0.0
        %946 = vmatpush1.msra.mxu0 0.0
        %947 = vmatprep.subr.mxu0 0.0
        %948 = vmatpush1.msra.mxu0 0.0
        %949 = vmatprep.subr.mxu0 0.0
        %950 = vmatpush1.msra.mxu0 0.0
        %951 = vmatprep.subr.mxu0 0.0
        %952 = vmatpush1.msra.mxu0 0.0
        %953 = vmatprep.subr.mxu0 0.0
        %954 = vmatpush1.msra.mxu0 0.0
        %955 = vmatprep.subr.mxu0 0.0
        %956 = vmatpush1.msra.mxu0 0.0
        %957 = vmatprep.subr.mxu0 0.0
        %958 = vmatpush1.msra.mxu0 0.0
        %959 = vmatprep.subr.mxu0 0.0
        %960 = vmatpush1.msra.mxu0 0.0
        %961 = vmatprep.subr.mxu0 0.0
        %962 = vmatpush1.msra.mxu0 0.0
        %963 = vmatprep.subr.mxu0 0.0
        %964 = vmatpush1.msra.mxu0 %v928
        %965 = vmatprep.subr.mxu0 0.0
        %966 = vmatpush2.msra.mxu0 0.0
        %967 = vmatprep.subr.mxu0 0.0
        %968 = vmatpush2.msra.mxu0 0.0
        %969 = vmatprep.subr.mxu0 0.0
        %970 = vmatpush2.msra.mxu0 0.0
        %971 = vmatprep.subr.mxu0 0.0
        %972 = vmatpush2.msra.mxu0 0.0
        %973 = vmatprep.subr.mxu0 0.0
        %974 = vmatpush2.msra.mxu0 0.0
        %975 = vmatprep.subr.mxu0 0.0
        %976 = vmatpush2.msra.mxu0 0.0
        %977 = vmatprep.subr.mxu0 0.0
        %978 = vmatpush2.msra.mxu0 0.0
        %979 = vmatprep.subr.mxu0 0.0
        %980 = vmatpush2.msra.mxu0 0.0
        %981 = vmatprep.subr.mxu0 0.0
        %982 = vmatpush2.msra.mxu0 0.0
        %983 = vmatprep.subr.mxu0 0.0
        %984 = vmatpush2.msra.mxu0 0.0
        %985 = vmatprep.subr.mxu0 0.0
        %986 = vmatpush2.msra.mxu0 0.0
        %987 = vmatprep.subr.mxu0 0.0
        %988 = vmatpush2.msra.mxu0 0.0
        %989 = vmatprep.subr.mxu0 0.0
        %990 = vmatpush2.msra.mxu0 0.0
        %991 = vmatprep.subr.mxu0 0.0
        %992 = vmatpush2.msra.mxu0 0.0
        %993 = vmatprep.subr.mxu0 0.0
        %994 = vmatpush2.msra.mxu0 0.0
        %995 = vmatprep.subr.mxu0 0.0
        %996 = vmatpush2.msra.mxu0 0.0
        %997 = vmatprep.mubr.f32.mxu0 0.0
        %998 = vmatmul.mubr.f32.gmra.mxu0 %v931
        %v999 = vpop.f32.mrf.mxu0
        %v1000 = vadd.f32 0.0, %v999
        %v1001 = vpop.f32.mrf.mxu0
        %1002 = vdwg.mxu0
        %1004 = vrot.lane.b32.xlu0 %v670, 8
        %v1005 = vpop.permute.xlu0 %1004
        %1008 = vrot.lane.b32.xlu0 %v835, 16
        %v1009 = vpop.permute.xlu0 %1008
        %1012 = vrot.lane.b32.xlu0 %v1000, 24
        %v1013 = vpop.permute.xlu0 %1012
        %v1015 = vsel %vm345, %v505, %v1005
        %vm1016 = vcmask 130048
        %v1017 = vsel %vm1016, %v1015, %v1009
        %vm1018 = vcmask 195584
        %v1019 = vsel %vm1018, %v1017, %v1013
        %v1020 = vadd.f32 %v273, %v1019
        %v1021 = vpack.c.bf16 %v1020, %v1020
        %v1022 = vld [vmem:[%s259] sm:$0xf]
        %v1023 = vld [vmem:[%s259 + $0x4] sm:$0xf]
        %v1024 = vld [vmem:[%s259 + $0x8] sm:$0xf]
        %v1025 = vld [vmem:[%s259 + $0xc] sm:$0xf]
        %v1030 = vunpack.c.l.b16 %v1022
        %v1031 = vunpack.c.l.b16 %v1023
        %v1032 = vunpack.c.l.b16 %v1024
        %v1033 = vunpack.c.l.b16 %v1025
        %v1034 = vpack.c.b16 %v1031, %v1030
        %v1035 = vpack.c.b16 %v1033, %v1032
        %v1039 = vsel %vm291, %v1021, 0
        %1041 = vmatprep.subr.bf16.mxu0 0
        %1042 = vmatpush1.bf16.msra.mxu0 0
        %1043 = vmatprep.subr.bf16.mxu0 0
        %1044 = vmatpush1.bf16.msra.mxu0 0
        %1045 = vmatprep.subr.bf16.mxu0 0
        %1046 = vmatpush1.bf16.msra.mxu0 0
        %1047 = vmatprep.subr.bf16.mxu0 0
        %1048 = vmatpush1.bf16.msra.mxu0 0
        %1049 = vmatprep.subr.bf16.mxu0 0
        %1050 = vmatpush1.bf16.msra.mxu0 0
        %1051 = vmatprep.subr.bf16.mxu0 0
        %1052 = vmatpush1.bf16.msra.mxu0 0
        %1053 = vmatprep.subr.bf16.mxu0 0
        %1054 = vmatpush1.bf16.msra.mxu0 %v1035
        %1055 = vmatprep.subr.bf16.mxu0 0
        %1056 = vmatpush1.bf16.msra.mxu0 %v1034
        %1057 = vmatprep.subr.bf16.mxu0 0
        %1058 = vmatpush2.bf16.msra.mxu0 0
        %1059 = vmatprep.subr.bf16.mxu0 0
        %1060 = vmatpush2.bf16.msra.mxu0 0
        %1061 = vmatprep.subr.bf16.mxu0 0
        %1062 = vmatpush2.bf16.msra.mxu0 0
        %1063 = vmatprep.subr.bf16.mxu0 0
        %1064 = vmatpush2.bf16.msra.mxu0 0
        %1065 = vmatprep.subr.bf16.mxu0 0
        %1066 = vmatpush2.bf16.msra.mxu0 0
        %1067 = vmatprep.subr.bf16.mxu0 0
        %1068 = vmatpush2.bf16.msra.mxu0 0
        %1069 = vmatprep.subr.bf16.mxu0 0
        %1070 = vmatpush2.bf16.msra.mxu0 0
        %1071 = vmatprep.subr.bf16.mxu0 0
        %1072 = vmatpush2.bf16.msra.mxu0 0
        %1073 = vmatprep.mubr.bf16.mxu0 0
        %1074 = vmatmul.mubr.bf16.gmra.mxu0 %v1039
        %v1075 = vpop.f32.mrf.mxu0
        %v1076 = vadd.f32 0.0, %v1075
        %v1077 = vpop.f32.mrf.mxu0
        %v1078 = vpop.f32.mrf.mxu0
        %v1079 = vpop.f32.mrf.mxu0
        %1080 = vdwg.mxu0
        %v1081 = vmax.f32 %v1076, 0.0
        %v1082 = vpack.c.bf16 %v1081, %v1081
        %v1083 = vld [vmem:[%s264] sm:$0xf]
        %v1084 = vld [vmem:[%s264 + $0x4] sm:$0xf]
        %v1085 = vld [vmem:[%s264 + $0x8] sm:$0xf]
        %v1086 = vld [vmem:[%s264 + $0xc] sm:$0xf]
        %v1087 = vld [vmem:[%s264 + $0x10] sm:$0xf]
        %v1088 = vld [vmem:[%s264 + $0x14] sm:$0xf]
        %v1089 = vld [vmem:[%s264 + $0x18] sm:$0xf]
        %v1090 = vld [vmem:[%s264 + $0x1c] sm:$0xf]
        %v1099 = vunpack.c.l.b16 %v1083
        %v1100 = vunpack.c.l.b16 %v1084
        %v1101 = vunpack.c.l.b16 %v1085
        %v1102 = vunpack.c.l.b16 %v1086
        %v1103 = vunpack.c.l.b16 %v1087
        %v1104 = vunpack.c.l.b16 %v1088
        %v1105 = vunpack.c.l.b16 %v1089
        %v1106 = vunpack.c.l.b16 %v1090
        %v1107 = vpack.c.b16 %v1100, %v1099
        %v1108 = vpack.c.b16 %v1102, %v1101
        %v1109 = vpack.c.b16 %v1104, %v1103
        %v1110 = vpack.c.b16 %v1106, %v1105
        %vm1115 = vcmask 523264
        %v1117 = vsel %vm1115, %v1082, 0
        %1119 = vmatprep.subr.bf16.mxu0 0
        %1120 = vmatpush1.bf16.msra.mxu0 0
        %1121 = vmatprep.subr.bf16.mxu0 0
        %1122 = vmatpush1.bf16.msra.mxu0 0
        %1123 = vmatprep.subr.bf16.mxu0 0
        %1124 = vmatpush1.bf16.msra.mxu0 0
        %1125 = vmatprep.subr.bf16.mxu0 0
        %1126 = vmatpush1.bf16.msra.mxu0 0
        %1127 = vmatprep.subr.bf16.mxu0 0
        %1128 = vmatpush1.bf16.msra.mxu0 %v1110
        %1129 = vmatprep.subr.bf16.mxu0 0
        %1130 = vmatpush1.bf16.msra.mxu0 %v1109
        %1131 = vmatprep.subr.bf16.mxu0 0
        %1132 = vmatpush1.bf16.msra.mxu0 %v1108
        %1133 = vmatprep.subr.bf16.mxu0 0
        %1134 = vmatpush1.bf16.msra.mxu0 %v1107
        %1135 = vmatprep.subr.bf16.mxu0 0
        %1136 = vmatpush2.bf16.msra.mxu0 0
        %1137 = vmatprep.subr.bf16.mxu0 0
        %1138 = vmatpush2.bf16.msra.mxu0 0
        %1139 = vmatprep.subr.bf16.mxu0 0
        %1140 = vmatpush2.bf16.msra.mxu0 0
        %1141 = vmatprep.subr.bf16.mxu0 0
        %1142 = vmatpush2.bf16.msra.mxu0 0
        %1143 = vmatprep.subr.bf16.mxu0 0
        %1144 = vmatpush2.bf16.msra.mxu0 0
        %1145 = vmatprep.subr.bf16.mxu0 0
        %1146 = vmatpush2.bf16.msra.mxu0 0
        %1147 = vmatprep.subr.bf16.mxu0 0
        %1148 = vmatpush2.bf16.msra.mxu0 0
        %1149 = vmatprep.subr.bf16.mxu0 0
        %1150 = vmatpush2.bf16.msra.mxu0 0
        %1151 = vmatprep.mubr.bf16.mxu0 0
        %1152 = vmatmul.mubr.bf16.gmra.mxu0 %v1117
        %v1153 = vpop.f32.mrf.mxu0
        %v1154 = vadd.f32 0.0, %v1153
        %v1155 = vpop.f32.mrf.mxu0
        %v1156 = vpop.f32.mrf.mxu0
        %v1157 = vpop.f32.mrf.mxu0
        %1158 = vdwg.mxu0
        %v1159 = vmax.f32 %v1154, 0.0
        %v1160 = vadd.f32 %v273, %v1159
        %1161 = vst.msk [vmem:[#allocation2] sm:$0xff] %vm291, %v1160
        %p1162 = scmp.eq.s32.totalorder %s23, 1
        // Predicated region
        $region41: #{tpu_custom_call.1} parent=35 // pred_check
          %p1163 = pneg %p1162
        $region42: #{tpu_custom_call.1} parent=35 // pred_check_branch
          %1165 = sbr.rel (%p1163) target = $region44
        $region43: #{tpu_custom_call.1} parent=35 // pred_region
          %1166 = vst.msk [vmem:[%s245] sm:$0xff] %vm291, %v1160
        $region44: #{tpu_custom_call.1} parent=35 // pred_fallthru
          _
        %s1167 = sand.u32 %s142, 1
        %s1168 = scalar_lea.sflag [#allocation4], %s1167
        %s1169 = sand.u32 %s142, 1
        %s1170 = smul.addr %s1169, 8
        %s1171 = scalar_lea.vmem [#allocation3], %s1170
        // Predicated region
        $region45: #{tpu_custom_call.1} parent=35 // pred_check
          %p1172 = pneg %p152
        $region46: #{tpu_custom_call.1} parent=35 // pred_check_branch
          %1174 = sbr.rel (%p1172) target = $region48
        $region47: #{tpu_custom_call.1} parent=35 // pred_region
          %s1176 = ssub.s32 128, 128
          %1177 = vsyncadd %s1168, %s1176
          %s1178 = smul.addr %s22, 128
          %s1179 = scalar_lea.hbm %s4, %s1178
          %s1181 = sshll.u32 %s1171, 4
          %s1182 = int_to_ptr.vmem [resolvable:$true] %s1181
          %1184 = dma.vmem_to_hbm [thread:$0]  %s1182, 128, %s1179, %s1168
        $region48: #{tpu_custom_call.1} parent=35 // pred_fallthru
          _
      $region36: #{tpu_custom_call.1} parent=5 // pred_fallthru
        _
      %p1185 = scmp.le.s32.totalorder 2, %s13
      // Predicated region
      $region49: #{tpu_custom_call.1} parent=5 // pred_check
        %p1186 = pneg %p1185
      $region50: #{tpu_custom_call.1} parent=5 // pred_check_branch
        %1188 = sbr.rel (%p1186) target = $region52
      $region51: #{tpu_custom_call.1} parent=5 // pred_region
        %s1189 = ssub.s32 %s13, 2
        // Predicated region
        $region53: #{tpu_custom_call.1} parent=51 // pred_check
          %p1190 = pneg %p158
        $region54: #{tpu_custom_call.1} parent=51 // pred_check_branch
          %1192 = sbr.rel (%p1190) target = $region56
        $region55: #{tpu_custom_call.1} parent=51 // pred_region
          %s1193 = sand.u32 %s143, 1
          %s1194 = scalar_lea.sflag [#allocation4], %s1193
          %s1195 = sand.u32 %s143, 1
          %s1196 = smul.addr %s1195, 8
          %s1197 = scalar_lea.vmem [#allocation3], %s1196
          %1198 = dma.done %s1194, 128
        $region56: #{tpu_custom_call.1} parent=51 // pred_fallthru
          _
      $region52: #{tpu_custom_call.1} parent=5 // pred_fallthru
        _
    $region6: #{tpu_custom_call.1} parent=1 // loop_footer
      %s17 = sadd.s32 1, %s13
    $region7: #{tpu_custom_call.1} parent=1 // loop_footer_branch
      %12 = sbr.rel target = $region3
    $region8: #{tpu_custom_call.1} parent=1 // loop_exit
      _
    %1199 = vsyncpa [#allocation4], 1
    %s1200 = scalar_lea.sflag [#allocation4], 1
    %1201 = vsyncpa %s1200, 1

</llo_original>
